<compile_context>
chip_gen: v6e
topology: v6e:2x2x1
jax: 0.10.0
libtpu: 0.0.40
codegen_flags: <defaults>
</compile_context>

<pallas_src>
import functools

import jax
import jax.numpy as jnp
from jax import lax
from jax.experimental import pallas as pl
from jax.experimental.pallas import tpu as pltpu


def _resblock_kernel(mask_ref, x_ref, w1_ref, b1_ref, w2_ref, b2_ref,
                     out_ref, xflat_ref, mid_ref,
                     *, H, W, K, pad, NB, B0, res_scale):
    """One batch group (NB images) per grid step.

    mask_ref : (K*K, M)    bf16  0/1 tap-boundary masks (loop-invariant input)
    x_ref    : (NB, C, HW) f32   NCHW input, spatial flattened (free reshape)
    w*_ref   : (C, K*K*C)  bf16  weights, [co, (dy*K+dx)*C + ci]
    b*_ref   : (C, 1)      f32   biases
    out_ref  : (1, NB, C, HW) f32
    xflat_ref: (C, L)      bf16  flat x staging buffer with 128-aligned margin B0
    mid_ref  : (C, L)      bf16  flat ReLU(conv1) staging buffer (same layout)
    """
    C = x_ref.shape[1]
    HW = H * W
    M = NB * HW
    L = xflat_ref.shape[1]

    # Tap offsets for a dense-pitch im2col: output pixel m reads src[m + off],
    # with out-of-image reads zeroed by the precomputed masks.
    offs = [(dy - pad) * W + (dx - pad) for dy in range(K) for dx in range(K)]
    mask_all = mask_ref[...]                      # (K*K, M) bf16, load once

    zeros_head = jnp.zeros((C, B0), xflat_ref.dtype)
    zeros_tail = jnp.zeros((C, L - (B0 + M)), xflat_ref.dtype)

    def im2col_gemm(src_ref, w_ref):
        # Single MXU GEMM with contraction depth K*K*C (9 bf16 tap slices
        # concatenated on the sublane axis; C is a multiple of the bf16 sublane
        # tile, so the concat is pure vreg stacking).
        parts = []
        for t, off in enumerate(offs):
            tap = src_ref[:, B0 + off: B0 + off + M]          # (C, M) bf16
            parts.append(tap * mask_all[t:t + 1, :])          # zero out-of-image taps
        cols = jnp.concatenate(parts, axis=0)                 # (K*K*C, M) bf16
        return jnp.dot(w_ref[...], cols,
                       preferred_element_type=jnp.float32)    # (C, M) f32

    # ---- stage x (bf16) into the flat scratch ---------------------------------
    # Only the read margins need zeroing (re-done every step so the grid axis is
    # safely "parallel"); the data region is fully overwritten below.
    xflat_ref[:, :B0] = zeros_head
    xflat_ref[:, B0 + M:] = zeros_tail
    for b in range(NB):                                       # NB lane-aligned bulk copies
        xflat_ref[:, B0 + b * HW: B0 + (b + 1) * HW] = (
            x_ref[b, :, :].astype(xflat_ref.dtype))

    # ---- conv1 + bias + ReLU (f32 epilogue on the VPU) -------------------------
    acc1 = im2col_gemm(xflat_ref, w1_ref)
    act = jnp.maximum(acc1 + b1_ref[...], 0.0)

    # ---- stage activation (bf16) for the second "same" conv --------------------
    mid_ref[:, :B0] = zeros_head
    mid_ref[:, B0 + M:] = zeros_tail
    mid_ref[:, B0:B0 + M] = act.astype(mid_ref.dtype)

    # ---- conv2 + bias + res_scale + residual -----------------------------------
    acc2 = im2col_gemm(mid_ref, w2_ref)
    res = (acc2 + b2_ref[...]) * res_scale

    for b in range(NB):
        # Residual taken straight from x_ref -> exact f32, no scratch aliasing.
        out_ref[0, b, :, :] = res[:, b * HW:(b + 1) * HW] + x_ref[b, :, :]


def resblock_pallas(x, w1, b1, w2, b2, *, res_scale=1.0, num_groups=None):
    """x: (N, C, H, W) f32 (NCHW); w*: (Cout, Cin, K, K); b*: (Cout,)."""
    N, C, H, W = x.shape
    K = w1.shape[-1]
    pad = K // 2
    HW = H * W

    # Batch grouping: fold NB images into each step's GEMM, but keep >=2
    # "parallel" steps when possible so both v7x TensorCores stay busy
    # (v5e/v6e have one TC, where folding is a strict win).
    if num_groups is None:
        num_groups = 2 if (N >= 2 and N % 2 == 0) else (1 if N == 1 else N)
    G = num_groups
    assert N % G == 0, "batch must divide evenly into groups"
    NB = N // G
    M = NB * HW

    max_off = pad * W + pad                               # largest |tap shift|
    B0 = ((max_off + 127) // 128) * 128                   # lane-aligned data base
    L = ((B0 + M + max_off + 127) // 128) * 128           # scratch lane extent

    # Free-layout glue: NCHW stays NCHW; reshapes are metadata-only.
    x2 = x.reshape(N, C, HW).astype(jnp.float32)
    w1f = jnp.transpose(w1, (0, 2, 3, 1)).reshape(C, K * K * C).astype(jnp.bfloat16)
    w2f = jnp.transpose(w2, (0, 2, 3, 1)).reshape(C, K * K * C).astype(jnp.bfloat16)
    b1f = b1.reshape(C, 1).astype(jnp.float32)
    b2f = b2.reshape(C, 1).astype(jnp.float32)

    # Loop-invariant 0/1 boundary masks for the K*K taps (tiled over NB images).
    yy, xx = jnp.meshgrid(jnp.arange(H), jnp.arange(W), indexing="ij")
    tap_masks = []
    for dy in range(K):
        for dx in range(K):
            ok = ((yy + dy - pad >= 0) & (yy + dy - pad < H) &
                  (xx + dx - pad >= 0) & (xx + dx - pad < W))
            tap_masks.append(ok.reshape(-1))
    mask = jnp.stack(tap_masks, axis=0).astype(jnp.bfloat16)   # (K*K, H*W)
    mask = jnp.tile(mask, (1, NB))                             # (K*K, M)

    kernel = functools.partial(_resblock_kernel, H=H, W=W, K=K, pad=pad,
                               NB=NB, B0=B0, res_scale=float(res_scale))

    out = pl.pallas_call(
        kernel,
        out_shape=jax.ShapeDtypeStruct((G, NB, C, HW), jnp.float32),
        grid_spec=pltpu.PrefetchScalarGridSpec(
            num_scalar_prefetch=0,
            grid=(G,),
            in_specs=[
                pl.BlockSpec((K * K, M), lambda g: (0, 0)),       # masks (bf16)
                pl.BlockSpec((NB, C, HW), lambda g: (g, 0, 0)),   # x (f32)
                pl.BlockSpec((C, K * K * C), lambda g: (0, 0)),   # w1 (bf16)
                pl.BlockSpec((C, 1), lambda g: (0, 0)),           # b1 (f32)
                pl.BlockSpec((C, K * K * C), lambda g: (0, 0)),   # w2 (bf16)
                pl.BlockSpec((C, 1), lambda g: (0, 0)),           # b2 (f32)
            ],
            out_specs=pl.BlockSpec((1, NB, C, HW), lambda g: (g, 0, 0, 0)),
            scratch_shapes=[pltpu.VMEM((C, L), jnp.bfloat16),     # xflat
                            pltpu.VMEM((C, L), jnp.bfloat16)],    # mid
        ),
        compiler_params=pltpu.CompilerParams(
            dimension_semantics=("parallel",)),
    )(mask, x2, w1f, b1f, w2f, b2f)

    # (G, NB, C, HW) -> (N, C, H, W): contiguous reshape, no transpose, no slice.
    return out.reshape(N, C, H, W)


def _resblock_ref(x_nchw, w1, b1, w2, b2, *, res_scale=1.0):
    """Pure-JAX f32 reference (same semantics as the PyTorch module)."""
    dn = ('NCHW', 'OIHW', 'NCHW')
    pad = w1.shape[-1] // 2
    y = lax.conv_general_dilated(x_nchw, w1, (1, 1), [(pad, pad), (pad, pad)],
                                 dimension_numbers=dn)
    y = y + b1.reshape(1, -1, 1, 1)
    y = jnp.maximum(y, 0.0)
    y = lax.conv_general_dilated(y, w2, (1, 1), [(pad, pad), (pad, pad)],
                                 dimension_numbers=dn)
    y = y + b2.reshape(1, -1, 1, 1)
    return y * res_scale + x_nchw


if __name__ == "__main__":
    # Small shapes consistent with the module: batch=2, n_feats=32, 16x16 spatial.
    N, C, H, W, K = 2, 32, 16, 16, 3
    res_scale = 0.1

    key = jax.random.PRNGKey(0)
    kx, k1, k2, kb1, kb2 = jax.random.split(key, 5)

    x = jax.random.normal(kx, (N, C, H, W), jnp.float32)
    fan_in = C * K * K
    bound = 1.0 / (fan_in ** 0.5)  # deterministic, PyTorch-like init scale
    w1 = jax.random.uniform(k1, (C, C, K, K), jnp.float32, -bound, bound)
    w2 = jax.random.uniform(k2, (C, C, K, K), jnp.float32, -bound, bound)
    b1 = jax.random.uniform(kb1, (C,), jnp.float32, -bound, bound)
    b2 = jax.random.uniform(kb2, (C,), jnp.float32, -bound, bound)

    out = jax.block_until_ready(
        resblock_pallas(x, w1, b1, w2, b2, res_scale=res_scale))
    ref = jax.block_until_ready(
        _resblock_ref(x, w1, b1, w2, b2, res_scale=res_scale))

    assert out.shape == (N, C, H, W)
    # bf16 MXU operands (f32 accumulation, exact f32 residual) vs f32 reference.
    max_err = float(jnp.max(jnp.abs(out - ref)))
    assert max_err < 2e-2, f"max abs err {max_err}"
    print("KERNEL_OK")
</pallas_src>

<mosaic_0001>
module attributes {stable_mosaic.version = 11 : i64} {
  func.func @_resblock_kernel(%arg0: i32, %arg1: memref<9x256xbf16, #tpu.memory_space<vmem>>, %arg2: memref<1x32x256xf32, #tpu.memory_space<vmem>>, %arg3: memref<32x288xbf16, #tpu.memory_space<vmem>>, %arg4: memref<32x1xf32, #tpu.memory_space<vmem>>, %arg5: memref<32x288xbf16, #tpu.memory_space<vmem>>, %arg6: memref<32x1xf32, #tpu.memory_space<vmem>>, %arg7: memref<1x1x32x256xf32, #tpu.memory_space<vmem>>, %arg8: memref<32x512xbf16, #tpu.memory_space<vmem>>, %arg9: memref<32x512xbf16, #tpu.memory_space<vmem>>) attributes {dimension_semantics = [#tpu.dimension_semantics<parallel>], iteration_bounds = array<i64: 2>, scalar_prefetch = 0 : i64, scratch_operands = 2 : i64, tpu.core_type = #tpu.core_type<tc>, window_params = [{pipeline_mode = #tpu.pipeline_mode<synchronous>, transform_indices = @transform_0, window_bounds = array<i64: 9, 256>}, {transform_indices = @transform_1, window_bounds = array<i64: 1, 32, 256>}, {pipeline_mode = #tpu.pipeline_mode<synchronous>, transform_indices = @transform_2, window_bounds = array<i64: 32, 288>}, {pipeline_mode = #tpu.pipeline_mode<synchronous>, transform_indices = @transform_3, window_bounds = array<i64: 32, 1>}, {pipeline_mode = #tpu.pipeline_mode<synchronous>, transform_indices = @transform_4, window_bounds = array<i64: 32, 288>}, {pipeline_mode = #tpu.pipeline_mode<synchronous>, transform_indices = @transform_5, window_bounds = array<i64: 32, 1>}, {transform_indices = @transform_6, window_bounds = array<i64: 1, 1, 32, 256>}]} {
    %c0 = arith.constant 0 : index
    %c0_0 = arith.constant 0 : index
    %0 = vector.load %arg1[%c0, %c0_0] : memref<9x256xbf16, #tpu.memory_space<vmem>>, vector<9x256xbf16>
    %cst = arith.constant 0.000000e+00 : bf16
    %1 = vector.broadcast %cst : bf16 to vector<32x128xbf16>
    %cst_1 = arith.constant 0.000000e+00 : bf16
    %2 = vector.broadcast %cst_1 : bf16 to vector<32x128xbf16>
    %c0_2 = arith.constant 0 : index
    %c0_3 = arith.constant 0 : index
    %3 = vector.load %arg8[%c0_2, %c0_3] : memref<32x512xbf16, #tpu.memory_space<vmem>>, vector<32x128xbf16>
    tpu.vector_store %arg8[%c0_2, %c0_3], %1 {strides = array<i32>} : memref<32x512xbf16, #tpu.memory_space<vmem>>, vector<32x128xbf16>,
    %c0_4 = arith.constant 0 : index
    %c384 = arith.constant 384 : index
    %4 = vector.load %arg8[%c0_4, %c384] : memref<32x512xbf16, #tpu.memory_space<vmem>>, vector<32x128xbf16>
    tpu.vector_store %arg8[%c0_4, %c384], %2 {strides = array<i32>} : memref<32x512xbf16, #tpu.memory_space<vmem>>, vector<32x128xbf16>,
    %c0_5 = arith.constant 0 : index
    %c0_6 = arith.constant 0 : index
    %c0_7 = arith.constant 0 : index
    %5 = vector.load %arg2[%c0_5, %c0_6, %c0_7] : memref<1x32x256xf32, #tpu.memory_space<vmem>>, vector<1x32x256xf32>
    %6 = vector.shape_cast %5 : vector<1x32x256xf32> to vector<32x256xf32>
    %7 = arith.truncf %6 : vector<32x256xf32> to vector<32x256xbf16>
    %c0_8 = arith.constant 0 : index
    %c128 = arith.constant 128 : index
    %8 = vector.load %arg8[%c0_8, %c128] : memref<32x512xbf16, #tpu.memory_space<vmem>>, vector<32x256xbf16>
    tpu.vector_store %arg8[%c0_8, %c128], %7 {strides = array<i32>} : memref<32x512xbf16, #tpu.memory_space<vmem>>, vector<32x256xbf16>,
    %c0_9 = arith.constant 0 : index
    %c111 = arith.constant 111 : index
    %9 = vector.load %arg8[%c0_9, %c111] : memref<32x512xbf16, #tpu.memory_space<vmem>>, vector<32x256xbf16>
    %10 = vector.extract_strided_slice %0 {offsets = [0, 0], sizes = [1, 256], strides = [1, 1]} : vector<9x256xbf16> to vector<1x256xbf16>
    %11 = vector.broadcast %10 : vector<1x256xbf16> to vector<32x256xbf16>
    %12 = arith.mulf %9, %11 : vector<32x256xbf16>
    %c0_10 = arith.constant 0 : index
    %c112 = arith.constant 112 : index
    %13 = vector.load %arg8[%c0_10, %c112] : memref<32x512xbf16, #tpu.memory_space<vmem>>, vector<32x256xbf16>
    %14 = vector.extract_strided_slice %0 {offsets = [1, 0], sizes = [1, 256], strides = [1, 1]} : vector<9x256xbf16> to vector<1x256xbf16>
    %15 = vector.broadcast %14 : vector<1x256xbf16> to vector<32x256xbf16>
    %16 = arith.mulf %13, %15 : vector<32x256xbf16>
    %c0_11 = arith.constant 0 : index
    %c113 = arith.constant 113 : index
    %17 = vector.load %arg8[%c0_11, %c113] : memref<32x512xbf16, #tpu.memory_space<vmem>>, vector<32x256xbf16>
    %18 = vector.extract_strided_slice %0 {offsets = [2, 0], sizes = [1, 256], strides = [1, 1]} : vector<9x256xbf16> to vector<1x256xbf16>
    %19 = vector.broadcast %18 : vector<1x256xbf16> to vector<32x256xbf16>
    %20 = arith.mulf %17, %19 : vector<32x256xbf16>
    %c0_12 = arith.constant 0 : index
    %c127 = arith.constant 127 : index
    %21 = vector.load %arg8[%c0_12, %c127] : memref<32x512xbf16, #tpu.memory_space<vmem>>, vector<32x256xbf16>
    %22 = vector.extract_strided_slice %0 {offsets = [3, 0], sizes = [1, 256], strides = [1, 1]} : vector<9x256xbf16> to vector<1x256xbf16>
    %23 = vector.broadcast %22 : vector<1x256xbf16> to vector<32x256xbf16>
    %24 = arith.mulf %21, %23 : vector<32x256xbf16>
    %c0_13 = arith.constant 0 : index
    %c128_14 = arith.constant 128 : index
    %25 = vector.load %arg8[%c0_13, %c128_14] : memref<32x512xbf16, #tpu.memory_space<vmem>>, vector<32x256xbf16>
    %26 = vector.extract_strided_slice %0 {offsets = [4, 0], sizes = [1, 256], strides = [1, 1]} : vector<9x256xbf16> to vector<1x256xbf16>
    %27 = vector.broadcast %26 : vector<1x256xbf16> to vector<32x256xbf16>
    %28 = arith.mulf %25, %27 : vector<32x256xbf16>
    %c0_15 = arith.constant 0 : index
    %c129 = arith.constant 129 : index
    %29 = vector.load %arg8[%c0_15, %c129] : memref<32x512xbf16, #tpu.memory_space<vmem>>, vector<32x256xbf16>
    %30 = vector.extract_strided_slice %0 {offsets = [5, 0], sizes = [1, 256], strides = [1, 1]} : vector<9x256xbf16> to vector<1x256xbf16>
    %31 = vector.broadcast %30 : vector<1x256xbf16> to vector<32x256xbf16>
    %32 = arith.mulf %29, %31 : vector<32x256xbf16>
    %c0_16 = arith.constant 0 : index
    %c143 = arith.constant 143 : index
    %33 = vector.load %arg8[%c0_16, %c143] : memref<32x512xbf16, #tpu.memory_space<vmem>>, vector<32x256xbf16>
    %34 = vector.extract_strided_slice %0 {offsets = [6, 0], sizes = [1, 256], strides = [1, 1]} : vector<9x256xbf16> to vector<1x256xbf16>
    %35 = vector.broadcast %34 : vector<1x256xbf16> to vector<32x256xbf16>
    %36 = arith.mulf %33, %35 : vector<32x256xbf16>
    %c0_17 = arith.constant 0 : index
    %c144 = arith.constant 144 : index
    %37 = vector.load %arg8[%c0_17, %c144] : memref<32x512xbf16, #tpu.memory_space<vmem>>, vector<32x256xbf16>
    %38 = vector.extract_strided_slice %0 {offsets = [7, 0], sizes = [1, 256], strides = [1, 1]} : vector<9x256xbf16> to vector<1x256xbf16>
    %39 = vector.broadcast %38 : vector<1x256xbf16> to vector<32x256xbf16>
    %40 = arith.mulf %37, %39 : vector<32x256xbf16>
    %c0_18 = arith.constant 0 : index
    %c145 = arith.constant 145 : index
    %41 = vector.load %arg8[%c0_18, %c145] : memref<32x512xbf16, #tpu.memory_space<vmem>>, vector<32x256xbf16>
    %42 = vector.extract_strided_slice %0 {offsets = [8, 0], sizes = [1, 256], strides = [1, 1]} : vector<9x256xbf16> to vector<1x256xbf16>
    %43 = vector.broadcast %42 : vector<1x256xbf16> to vector<32x256xbf16>
    %44 = arith.mulf %41, %43 : vector<32x256xbf16>
    %45 = tpu.concatenate %12, %16, %20, %24, %28, %32, %36, %40, %44 in 0 : vector<32x256xbf16>, vector<32x256xbf16>, vector<32x256xbf16>, vector<32x256xbf16>, vector<32x256xbf16>, vector<32x256xbf16>, vector<32x256xbf16>, vector<32x256xbf16>, vector<32x256xbf16> -> vector<288x256xbf16>
    %c0_19 = arith.constant 0 : index
    %c0_20 = arith.constant 0 : index
    %46 = vector.load %arg3[%c0_19, %c0_20] : memref<32x288xbf16, #tpu.memory_space<vmem>>, vector<32x288xbf16>
    %cst_21 = arith.constant dense<0.000000e+00> : vector<32x256xf32>
    %47 = tpu.matmul %46, %45, %cst_21 {dimension_numbers = #tpu.dot_dimension_numbers<[1], [0], [0], [1], [0, 0, 1, 1], [], []>} : vector<32x288xbf16>, vector<288x256xbf16>, vector<32x256xf32> -> vector<32x256xf32>
    %c0_22 = arith.constant 0 : index
    %c0_23 = arith.constant 0 : index
    %48 = vector.load %arg4[%c0_22, %c0_23] : memref<32x1xf32, #tpu.memory_space<vmem>>, vector<32x1xf32>
    %49 = vector.broadcast %48 : vector<32x1xf32> to vector<32x256xf32>
    %50 = arith.addf %47, %49 : vector<32x256xf32>
    %cst_24 = arith.constant 0.000000e+00 : f32
    %51 = vector.broadcast %cst_24 : f32 to vector<32x256xf32>
    %52 = arith.maximumf %50, %51 : vector<32x256xf32>
    %c0_25 = arith.constant 0 : index
    %c0_26 = arith.constant 0 : index
    %53 = vector.load %arg9[%c0_25, %c0_26] : memref<32x512xbf16, #tpu.memory_space<vmem>>, vector<32x128xbf16>
    tpu.vector_store %arg9[%c0_25, %c0_26], %1 {strides = array<i32>} : memref<32x512xbf16, #tpu.memory_space<vmem>>, vector<32x128xbf16>,
    %c0_27 = arith.constant 0 : index
    %c384_28 = arith.constant 384 : index
    %54 = vector.load %arg9[%c0_27, %c384_28] : memref<32x512xbf16, #tpu.memory_space<vmem>>, vector<32x128xbf16>
    tpu.vector_store %arg9[%c0_27, %c384_28], %2 {strides = array<i32>} : memref<32x512xbf16, #tpu.memory_space<vmem>>, vector<32x128xbf16>,
    %55 = arith.truncf %52 : vector<32x256xf32> to vector<32x256xbf16>
    %c0_29 = arith.constant 0 : index
    %c128_30 = arith.constant 128 : index
    %56 = vector.load %arg9[%c0_29, %c128_30] : memref<32x512xbf16, #tpu.memory_space<vmem>>, vector<32x256xbf16>
    tpu.vector_store %arg9[%c0_29, %c128_30], %55 {strides = array<i32>} : memref<32x512xbf16, #tpu.memory_space<vmem>>, vector<32x256xbf16>,
    %c0_31 = arith.constant 0 : index
    %c111_32 = arith.constant 111 : index
    %57 = vector.load %arg9[%c0_31, %c111_32] : memref<32x512xbf16, #tpu.memory_space<vmem>>, vector<32x256xbf16>
    %58 = vector.extract_strided_slice %0 {offsets = [0, 0], sizes = [1, 256], strides = [1, 1]} : vector<9x256xbf16> to vector<1x256xbf16>
    %59 = vector.broadcast %58 : vector<1x256xbf16> to vector<32x256xbf16>
    %60 = arith.mulf %57, %59 : vector<32x256xbf16>
    %c0_33 = arith.constant 0 : index
    %c112_34 = arith.constant 112 : index
    %61 = vector.load %arg9[%c0_33, %c112_34] : memref<32x512xbf16, #tpu.memory_space<vmem>>, vector<32x256xbf16>
    %62 = vector.extract_strided_slice %0 {offsets = [1, 0], sizes = [1, 256], strides = [1, 1]} : vector<9x256xbf16> to vector<1x256xbf16>
    %63 = vector.broadcast %62 : vector<1x256xbf16> to vector<32x256xbf16>
    %64 = arith.mulf %61, %63 : vector<32x256xbf16>
    %c0_35 = arith.constant 0 : index
    %c113_36 = arith.constant 113 : index
    %65 = vector.load %arg9[%c0_35, %c113_36] : memref<32x512xbf16, #tpu.memory_space<vmem>>, vector<32x256xbf16>
    %66 = vector.extract_strided_slice %0 {offsets = [2, 0], sizes = [1, 256], strides = [1, 1]} : vector<9x256xbf16> to vector<1x256xbf16>
    %67 = vector.broadcast %66 : vector<1x256xbf16> to vector<32x256xbf16>
    %68 = arith.mulf %65, %67 : vector<32x256xbf16>
    %c0_37 = arith.constant 0 : index
    %c127_38 = arith.constant 127 : index
    %69 = vector.load %arg9[%c0_37, %c127_38] : memref<32x512xbf16, #tpu.memory_space<vmem>>, vector<32x256xbf16>
    %70 = vector.extract_strided_slice %0 {offsets = [3, 0], sizes = [1, 256], strides = [1, 1]} : vector<9x256xbf16> to vector<1x256xbf16>
    %71 = vector.broadcast %70 : vector<1x256xbf16> to vector<32x256xbf16>
    %72 = arith.mulf %69, %71 : vector<32x256xbf16>
    %c0_39 = arith.constant 0 : index
    %c128_40 = arith.constant 128 : index
    %73 = vector.load %arg9[%c0_39, %c128_40] : memref<32x512xbf16, #tpu.memory_space<vmem>>, vector<32x256xbf16>
    %74 = vector.extract_strided_slice %0 {offsets = [4, 0], sizes = [1, 256], strides = [1, 1]} : vector<9x256xbf16> to vector<1x256xbf16>
    %75 = vector.broadcast %74 : vector<1x256xbf16> to vector<32x256xbf16>
    %76 = arith.mulf %73, %75 : vector<32x256xbf16>
    %c0_41 = arith.constant 0 : index
    %c129_42 = arith.constant 129 : index
    %77 = vector.load %arg9[%c0_41, %c129_42] : memref<32x512xbf16, #tpu.memory_space<vmem>>, vector<32x256xbf16>
    %78 = vector.extract_strided_slice %0 {offsets = [5, 0], sizes = [1, 256], strides = [1, 1]} : vector<9x256xbf16> to vector<1x256xbf16>
    %79 = vector.broadcast %78 : vector<1x256xbf16> to vector<32x256xbf16>
    %80 = arith.mulf %77, %79 : vector<32x256xbf16>
    %c0_43 = arith.constant 0 : index
    %c143_44 = arith.constant 143 : index
    %81 = vector.load %arg9[%c0_43, %c143_44] : memref<32x512xbf16, #tpu.memory_space<vmem>>, vector<32x256xbf16>
    %82 = vector.extract_strided_slice %0 {offsets = [6, 0], sizes = [1, 256], strides = [1, 1]} : vector<9x256xbf16> to vector<1x256xbf16>
    %83 = vector.broadcast %82 : vector<1x256xbf16> to vector<32x256xbf16>
    %84 = arith.mulf %81, %83 : vector<32x256xbf16>
    %c0_45 = arith.constant 0 : index
    %c144_46 = arith.constant 144 : index
    %85 = vector.load %arg9[%c0_45, %c144_46] : memref<32x512xbf16, #tpu.memory_space<vmem>>, vector<32x256xbf16>
    %86 = vector.extract_strided_slice %0 {offsets = [7, 0], sizes = [1, 256], strides = [1, 1]} : vector<9x256xbf16> to vector<1x256xbf16>
    %87 = vector.broadcast %86 : vector<1x256xbf16> to vector<32x256xbf16>
    %88 = arith.mulf %85, %87 : vector<32x256xbf16>
    %c0_47 = arith.constant 0 : index
    %c145_48 = arith.constant 145 : index
    %89 = vector.load %arg9[%c0_47, %c145_48] : memref<32x512xbf16, #tpu.memory_space<vmem>>, vector<32x256xbf16>
    %90 = vector.extract_strided_slice %0 {offsets = [8, 0], sizes = [1, 256], strides = [1, 1]} : vector<9x256xbf16> to vector<1x256xbf16>
    %91 = vector.broadcast %90 : vector<1x256xbf16> to vector<32x256xbf16>
    %92 = arith.mulf %89, %91 : vector<32x256xbf16>
    %93 = tpu.concatenate %60, %64, %68, %72, %76, %80, %84, %88, %92 in 0 : vector<32x256xbf16>, vector<32x256xbf16>, vector<32x256xbf16>, vector<32x256xbf16>, vector<32x256xbf16>, vector<32x256xbf16>, vector<32x256xbf16>, vector<32x256xbf16>, vector<32x256xbf16> -> vector<288x256xbf16>
    %c0_49 = arith.constant 0 : index
    %c0_50 = arith.constant 0 : index
    %94 = vector.load %arg5[%c0_49, %c0_50] : memref<32x288xbf16, #tpu.memory_space<vmem>>, vector<32x288xbf16>
    %cst_51 = arith.constant dense<0.000000e+00> : vector<32x256xf32>
    %95 = tpu.matmul %94, %93, %cst_51 {dimension_numbers = #tpu.dot_dimension_numbers<[1], [0], [0], [1], [0, 0, 1, 1], [], []>} : vector<32x288xbf16>, vector<288x256xbf16>, vector<32x256xf32> -> vector<32x256xf32>
    %c0_52 = arith.constant 0 : index
    %c0_53 = arith.constant 0 : index
    %96 = vector.load %arg6[%c0_52, %c0_53] : memref<32x1xf32, #tpu.memory_space<vmem>>, vector<32x1xf32>
    %97 = vector.broadcast %96 : vector<32x1xf32> to vector<32x256xf32>
    %98 = arith.addf %95, %97 : vector<32x256xf32>
    %cst_54 = arith.constant 1.000000e-01 : f32
    %99 = vector.broadcast %cst_54 : f32 to vector<32x256xf32>
    %100 = arith.mulf %98, %99 : vector<32x256xf32>
    %c0_55 = arith.constant 0 : index
    %c0_56 = arith.constant 0 : index
    %c0_57 = arith.constant 0 : index
    %101 = vector.load %arg2[%c0_55, %c0_56, %c0_57] : memref<1x32x256xf32, #tpu.memory_space<vmem>>, vector<1x32x256xf32>
    %102 = vector.shape_cast %101 : vector<1x32x256xf32> to vector<32x256xf32>
    %103 = arith.addf %100, %102 : vector<32x256xf32>
    %c0_58 = arith.constant 0 : index
    %c0_59 = arith.constant 0 : index
    %c0_60 = arith.constant 0 : index
    %c0_61 = arith.constant 0 : index
    %104 = vector.load %arg7[%c0_58, %c0_59, %c0_60, %c0_61] : memref<1x1x32x256xf32, #tpu.memory_space<vmem>>, vector<1x1x32x256xf32>
    %105 = vector.shape_cast %104 : vector<1x1x32x256xf32> to vector<32x256xf32>
    %106 = vector.shape_cast %103 : vector<32x256xf32> to vector<1x1x32x256xf32>
    tpu.vector_store %arg7[%c0_58, %c0_59, %c0_60, %c0_61], %106 {strides = array<i32>} : memref<1x1x32x256xf32, #tpu.memory_space<vmem>>, vector<1x1x32x256xf32>,
    return
  }
  func.func @transform_0(%arg0: i32) -> (i32, i32) {
    %c0_i32 = arith.constant 0 : i32
    %c0_i32_0 = arith.constant 0 : i32
    %c0_i32_1 = arith.constant 0 : i32
    return %c0_i32, %c0_i32_0 : i32, i32
  }
  func.func @transform_1(%arg0: i32) -> (i32, i32, i32) {
    %c0_i32 = arith.constant 0 : i32
    %c0_i32_0 = arith.constant 0 : i32
    %c0_i32_1 = arith.constant 0 : i32
    return %arg0, %c0_i32, %c0_i32_0 : i32, i32, i32
  }
  func.func @transform_2(%arg0: i32) -> (i32, i32) {
    %c0_i32 = arith.constant 0 : i32
    %c0_i32_0 = arith.constant 0 : i32
    %c0_i32_1 = arith.constant 0 : i32
    return %c0_i32, %c0_i32_0 : i32, i32
  }
  func.func @transform_3(%arg0: i32) -> (i32, i32) {
    %c0_i32 = arith.constant 0 : i32
    %c0_i32_0 = arith.constant 0 : i32
    %c0_i32_1 = arith.constant 0 : i32
    return %c0_i32, %c0_i32_0 : i32, i32
  }
  func.func @transform_4(%arg0: i32) -> (i32, i32) {
    %c0_i32 = arith.constant 0 : i32
    %c0_i32_0 = arith.constant 0 : i32
    %c0_i32_1 = arith.constant 0 : i32
    return %c0_i32, %c0_i32_0 : i32, i32
  }
  func.func @transform_5(%arg0: i32) -> (i32, i32) {
    %c0_i32 = arith.constant 0 : i32
    %c0_i32_0 = arith.constant 0 : i32
    %c0_i32_1 = arith.constant 0 : i32
    return %c0_i32, %c0_i32_0 : i32, i32
  }
  func.func @transform_6(%arg0: i32) -> (i32, i32, i32, i32) {
    %c0_i32 = arith.constant 0 : i32
    %c0_i32_0 = arith.constant 0 : i32
    %c0_i32_1 = arith.constant 0 : i32
    %c0_i32_2 = arith.constant 0 : i32
    return %arg0, %c0_i32, %c0_i32_0, %c0_i32_1 : i32, i32, i32, i32
  }
}

</mosaic_0001>

<llo_original>
// kernel: tpu_custom_call.1
$region0: #{tpu_custom_call.1}
  #allocation0 [shape = 'u32[]', space=smem, size = 0x4, offset = 0x4, fixed_abs, tag = 'smem constant byte address 0x4 - core index']
  #allocation1 [shape = 'u32[144,128]{1,0:T(1,128)}', space=vmem, size = 0x12000, scoped, tag = 'internal scratch']
  #allocation2 [shape = 'bf16[32,512]{1,0:T(8,128)(2,1)}', space=vmem, size = 0x8000, scoped, tag = 'scratch operand']
  #allocation3 [shape = 'bf16[32,512]{1,0:T(8,128)(2,1)}', space=vmem, size = 0x8000, scoped, tag = 'scratch operand']
  %s0 = inlined_call_operand.vmem [shape: bf16[9,256], index: 0, kind: input, shape index: {}]
  %s1 = inlined_call_operand.hbm [shape: f32[2,32,256], index: 1, kind: input, shape index: {}]
  %s2 = inlined_call_operand.vmem [shape: bf16[32,288], index: 2, kind: input, shape index: {}]
  %s3 = inlined_call_operand.vmem [shape: f32[32,1], index: 3, kind: input, shape index: {}]
  %s4 = inlined_call_operand.hbm [shape: bf16[32,288], index: 4, kind: input, shape index: {}]
  %s5 = inlined_call_operand.vmem [shape: f32[32,1], index: 5, kind: input, shape index: {}]
  %s6 = inlined_call_operand.hbm [shape: f32[2,1,32,256], index: 6, kind: output, shape index: {}]
  %s7 = sld [smem:[#allocation0]]
  $region65: #{tpu_custom_call.1} parent=0
    _
  %s9 = ssub.s32 1, %s7
  %s10 = scalar_select 0, %s9, %s7
  $region1: #{tpu_custom_call.1} parent=0
    #allocation4 [shape = 'u8[65536]{0}', space=vmem, size = 0x10000, scoped, tag = 'input window, operand 1']
    #allocation5 [shape = 's32[2]{0}', space=sflag, size = 0x8, scoped, tag = 'scoped memory for tpu_custom_call.1']
    #allocation6 [shape = 's32[2]{0}', space=sflag, size = 0x8, scoped, tag = 'scoped memory for tpu_custom_call.1']
    #allocation7 [shape = 'u8[24576]{0}', space=vmem, size = 0x6000, scoped, tag = 'input window, operand 4, single buffered']
    #allocation8 [shape = 's32[1]{0}', space=sflag, size = 0x4, scoped, tag = 'scoped memory for tpu_custom_call.1']
    #allocation9 [shape = 'u8[65536]{0}', space=vmem, size = 0x10000, scoped, tag = 'output window, operand 0']
    %11 = vsyncpa [#allocation5], 0
    %s12 = scalar_lea.sflag [#allocation5], 1
    %13 = vsyncpa %s12, 0
    %14 = vsyncpa [#allocation8], 0
    %15 = vsyncpa [#allocation6], 0
    %s16 = scalar_lea.sflag [#allocation6], 1
    %17 = vsyncpa %s16, 0
    loop: start=0, step=1, limit=4
    $region2: #{tpu_custom_call.1} parent=1 // loop_pre_header
      _
    $region3: #{tpu_custom_call.1} parent=1 // loop_header
      %s19 = sphi 0, %s23
      %p20 = scmp.ge.s32.totalorder %s19, 4
      %s27 = sphi 0, %s27
      %s29 = sphi 0, %s27
      %s30 = sphi 0, %s29
      %s44 = sphi 0, %s30
      %s50 = sphi 0, %s52
      %s53 = sphi 0, %s50
      %s54 = sphi 0, %s53
      %s70 = sphi 0, %s54
      %s74 = sphi 0, %s74
      %s76 = sphi 0, %s74
      %s77 = sphi 0, %s76
      %s91 = sphi 0, %s77
      %s95 = sphi 0, %s95
      %s97 = sphi 0, %s95
      %s98 = sphi 0, %s97
      %s112 = sphi 0, %s98
      %s116 = sphi 0, %s116
      %s118 = sphi 0, %s116
      %s119 = sphi 0, %s118
      %s133 = sphi 0, %s119
      %s137 = sphi 0, %s137
      %s139 = sphi 0, %s137
      %s140 = sphi 0, %s139
      %s154 = sphi 0, %s140
      %s160 = sphi 0, %s162
      %s163 = sphi 0, %s160
      %s164 = sphi 0, %s163
      %s180 = sphi 0, %s164
    $region4: #{tpu_custom_call.1} parent=1 // loop_header_branch
      %22 = sbr.rel (%p20) target = $region8
    $region5: #{tpu_custom_call.1} parent=1 // loop_body
      %s24 = ssub.s32 %s19, 1
      %s25 = ssub.s32 %s19, 2
      %s26 = sadd.s32 %s19, 1
      %s28 = sadd.s32 %s27, 1
      %p31 = scmp.eq.s32.totalorder %s19, 1
      %p32 = scmp.ne.s32.totalorder %s27, %s29
      %p33 = scmp.eq.s32.totalorder %s19, 0
      %p34 = por %p32, %p33
      %p35 = scmp.ne.s32.totalorder %s27, %s29
      %p36 = scmp.eq.s32.totalorder %s24, 1
      %p37 = por %p35, %p36
      %p38 = scmp.ne.s32.totalorder %s29, %s30
      %p39 = scmp.eq.s32.totalorder %s24, 0
      %p40 = por %p38, %p39
      %p41 = scmp.ne.s32.totalorder %s29, %s30
      %p42 = scmp.eq.s32.totalorder %s25, 1
      %p43 = por %p41, %p42
      %p45 = scmp.ne.s32.totalorder %s30, %s44
      %p46 = scmp.eq.s32.totalorder %s25, 0
      %p47 = por %p45, %p46
      %s48 = ssub.s32 %s19, %s26
      %p49 = scmp.eq.s32.totalorder %s48, 0
      %s51 = sadd.s32 %s50, 1
      %s52 = scalar_select %p49, %s50, %s51
      %p55 = pneg %p49
      %p56 = scmp.eq.s32.totalorder %s19, 1
      %p57 = por %p55, %p56
      %p58 = scmp.ne.s32.totalorder %s50, %s53
      %p59 = scmp.eq.s32.totalorder %s19, 0
      %p60 = por %p58, %p59
      %p61 = scmp.ne.s32.totalorder %s50, %s53
      %p62 = scmp.eq.s32.totalorder %s24, 1
      %p63 = por %p61, %p62
      %p64 = scmp.ne.s32.totalorder %s53, %s54
      %p65 = scmp.eq.s32.totalorder %s24, 0
      %p66 = por %p64, %p65
      %p67 = scmp.ne.s32.totalorder %s53, %s54
      %p68 = scmp.eq.s32.totalorder %s25, 1
      %p69 = por %p67, %p68
      %p71 = scmp.ne.s32.totalorder %s54, %s70
      %p72 = scmp.eq.s32.totalorder %s25, 0
      %p73 = por %p71, %p72
      %s75 = sadd.s32 %s74, 1
      %p78 = scmp.eq.s32.totalorder %s19, 1
      %p79 = scmp.ne.s32.totalorder %s74, %s76
      %p80 = scmp.eq.s32.totalorder %s19, 0
      %p81 = por %p79, %p80
      %p82 = scmp.ne.s32.totalorder %s74, %s76
      %p83 = scmp.eq.s32.totalorder %s24, 1
      %p84 = por %p82, %p83
      %p85 = scmp.ne.s32.totalorder %s76, %s77
      %p86 = scmp.eq.s32.totalorder %s24, 0
      %p87 = por %p85, %p86
      %p88 = scmp.ne.s32.totalorder %s76, %s77
      %p89 = scmp.eq.s32.totalorder %s25, 1
      %p90 = por %p88, %p89
      %p92 = scmp.ne.s32.totalorder %s77, %s91
      %p93 = scmp.eq.s32.totalorder %s25, 0
      %p94 = por %p92, %p93
      %s96 = sadd.s32 %s95, 1
      %p99 = scmp.eq.s32.totalorder %s19, 1
      %p100 = scmp.ne.s32.totalorder %s95, %s97
      %p101 = scmp.eq.s32.totalorder %s19, 0
      %p102 = por %p100, %p101
      %p103 = scmp.ne.s32.totalorder %s95, %s97
      %p104 = scmp.eq.s32.totalorder %s24, 1
      %p105 = por %p103, %p104
      %p106 = scmp.ne.s32.totalorder %s97, %s98
      %p107 = scmp.eq.s32.totalorder %s24, 0
      %p108 = por %p106, %p107
      %p109 = scmp.ne.s32.totalorder %s97, %s98
      %p110 = scmp.eq.s32.totalorder %s25, 1
      %p111 = por %p109, %p110
      %p113 = scmp.ne.s32.totalorder %s98, %s112
      %p114 = scmp.eq.s32.totalorder %s25, 0
      %p115 = por %p113, %p114
      %s117 = sadd.s32 %s116, 1
      %p120 = scmp.eq.s32.totalorder %s19, 1
      %p121 = scmp.ne.s32.totalorder %s116, %s118
      %p122 = scmp.eq.s32.totalorder %s19, 0
      %p123 = por %p121, %p122
      %p124 = scmp.ne.s32.totalorder %s116, %s118
      %p125 = scmp.eq.s32.totalorder %s24, 1
      %p126 = por %p124, %p125
      %p127 = scmp.ne.s32.totalorder %s118, %s119
      %p128 = scmp.eq.s32.totalorder %s24, 0
      %p129 = por %p127, %p128
      %p130 = scmp.ne.s32.totalorder %s118, %s119
      %p131 = scmp.eq.s32.totalorder %s25, 1
      %p132 = por %p130, %p131
      %p134 = scmp.ne.s32.totalorder %s119, %s133
      %p135 = scmp.eq.s32.totalorder %s25, 0
      %p136 = por %p134, %p135
      %s138 = sadd.s32 %s137, 1
      %p141 = scmp.eq.s32.totalorder %s19, 1
      %p142 = scmp.ne.s32.totalorder %s137, %s139
      %p143 = scmp.eq.s32.totalorder %s19, 0
      %p144 = por %p142, %p143
      %p145 = scmp.ne.s32.totalorder %s137, %s139
      %p146 = scmp.eq.s32.totalorder %s24, 1
      %p147 = por %p145, %p146
      %p148 = scmp.ne.s32.totalorder %s139, %s140
      %p149 = scmp.eq.s32.totalorder %s24, 0
      %p150 = por %p148, %p149
      %p151 = scmp.ne.s32.totalorder %s139, %s140
      %p152 = scmp.eq.s32.totalorder %s25, 1
      %p153 = por %p151, %p152
      %p155 = scmp.ne.s32.totalorder %s140, %s154
      %p156 = scmp.eq.s32.totalorder %s25, 0
      %p157 = por %p155, %p156
      %s158 = ssub.s32 %s19, %s26
      %p159 = scmp.eq.s32.totalorder %s158, 0
      %s161 = sadd.s32 %s160, 1
      %s162 = scalar_select %p159, %s160, %s161
      %p165 = pneg %p159
      %p166 = scmp.eq.s32.totalorder %s19, 1
      %p167 = por %p165, %p166
      %p168 = scmp.ne.s32.totalorder %s160, %s163
      %p169 = scmp.eq.s32.totalorder %s19, 0
      %p170 = por %p168, %p169
      %p171 = scmp.ne.s32.totalorder %s160, %s163
      %p172 = scmp.eq.s32.totalorder %s24, 1
      %p173 = por %p171, %p172
      %p174 = scmp.ne.s32.totalorder %s163, %s164
      %p175 = scmp.eq.s32.totalorder %s24, 0
      %p176 = por %p174, %p175
      %p177 = scmp.ne.s32.totalorder %s163, %s164
      %p178 = scmp.eq.s32.totalorder %s25, 1
      %p179 = por %p177, %p178
      %p181 = scmp.ne.s32.totalorder %s164, %s180
      %p182 = scmp.eq.s32.totalorder %s25, 0
      %p183 = por %p181, %p182
      %p184 = scmp.le.s32.totalorder 1, %s19
      %p185 = scmp.lt.s32.totalorder %s19, 3
      %p186 = pnand %p184, %p185
      %p187 = pneg %p186
      // Predicated region
      $region9: #{tpu_custom_call.1} parent=5 // pred_check
        _
      $region10: #{tpu_custom_call.1} parent=5 // pred_check_branch
        %189 = sbr.rel (%p186) target = $region12
      $region11: #{tpu_custom_call.1} parent=5 // pred_region
        %s190 = ssub.s32 %s19, 1
        // Predicated region
        $region13: #{tpu_custom_call.1} parent=11 // pred_check
          %p191 = pneg %p40
        $region14: #{tpu_custom_call.1} parent=11 // pred_check_branch
          %193 = sbr.rel (%p191) target = $region16
        $region15: #{tpu_custom_call.1} parent=11 // pred_region
          _
        $region16: #{tpu_custom_call.1} parent=11 // pred_fallthru
          _
        // Predicated region
        $region17: #{tpu_custom_call.1} parent=11 // pred_check
          %p194 = pneg %p87
        $region18: #{tpu_custom_call.1} parent=11 // pred_check_branch
          %196 = sbr.rel (%p194) target = $region20
        $region19: #{tpu_custom_call.1} parent=11 // pred_region
          _
        $region20: #{tpu_custom_call.1} parent=11 // pred_fallthru
          _
        // Predicated region
        $region21: #{tpu_custom_call.1} parent=11 // pred_check
          %p197 = pneg %p108
        $region22: #{tpu_custom_call.1} parent=11 // pred_check_branch
          %199 = sbr.rel (%p197) target = $region24
        $region23: #{tpu_custom_call.1} parent=11 // pred_region
          _
        $region24: #{tpu_custom_call.1} parent=11 // pred_fallthru
          _
        // Predicated region
        $region25: #{tpu_custom_call.1} parent=11 // pred_check
          %p200 = pneg %p129
        $region26: #{tpu_custom_call.1} parent=11 // pred_check_branch
          %202 = sbr.rel (%p200) target = $region28
        $region27: #{tpu_custom_call.1} parent=11 // pred_region
          %s204 = ssub.s32 768, 768
          %205 = vsyncadd [#allocation8], %s204
          %s206 = sshll.u32 [#allocation7], 4
          %s207 = int_to_ptr.vmem [resolvable:$true] %s206
          %212 = dma.hbm_to_vmem [thread:$0]  %s4, 768, %s207, [#allocation8], 192, 192, 12
        $region28: #{tpu_custom_call.1} parent=11 // pred_fallthru
          _
        // Predicated region
        $region29: #{tpu_custom_call.1} parent=11 // pred_check
          %p213 = pneg %p150
        $region30: #{tpu_custom_call.1} parent=11 // pred_check_branch
          %215 = sbr.rel (%p213) target = $region32
        $region31: #{tpu_custom_call.1} parent=11 // pred_region
          _
        $region32: #{tpu_custom_call.1} parent=11 // pred_fallthru
          _
      $region12: #{tpu_custom_call.1} parent=5 // pred_fallthru
        _
      %p216 = scmp.lt.s32.totalorder %s19, 2
      // Predicated region
      $region33: #{tpu_custom_call.1} parent=5 // pred_check
        %p217 = pneg %p216
      $region34: #{tpu_custom_call.1} parent=5 // pred_check_branch
        %219 = sbr.rel (%p217) target = $region36
      $region35: #{tpu_custom_call.1} parent=5 // pred_region
        // Predicated region
        $region37: #{tpu_custom_call.1} parent=35 // pred_check
          %p220 = pneg %p60
        $region38: #{tpu_custom_call.1} parent=35 // pred_check_branch
          %222 = sbr.rel (%p220) target = $region40
        $region39: #{tpu_custom_call.1} parent=35 // pred_region
          %s223 = sand.u32 %s50, 1
          %s224 = scalar_lea.sflag [#allocation5], %s223
          %s225 = sand.u32 %s50, 1
          %s226 = smul.addr %s225, 64
          %s227 = scalar_lea.vmem [#allocation4], %s226
          %s229 = ssub.s32 1024, 1024
          %230 = vsyncadd %s224, %s229
          %s231 = smul.addr %s19, 8
          %s232 = smul.addr %s231, 128
          %s233 = scalar_lea.hbm %s1, %s232
          %s234 = sshll.u32 %s227, 4
          %s235 = int_to_ptr.vmem [resolvable:$true] %s234
          %240 = dma.hbm_to_vmem [thread:$0]  %s233, 1024, %s235, %s224, 256, 256, 16
        $region40: #{tpu_custom_call.1} parent=35 // pred_fallthru
          _
      $region36: #{tpu_custom_call.1} parent=5 // pred_fallthru
        _
      %p241 = scmp.le.s32.totalorder 1, %s19
      %p242 = scmp.lt.s32.totalorder %s19, 3
      %p243 = pnand %p241, %p242
      %p244 = pneg %p243
      // Predicated region
      $region41: #{tpu_custom_call.1} parent=5 // pred_check
        _
      $region42: #{tpu_custom_call.1} parent=5 // pred_check_branch
        %246 = sbr.rel (%p243) target = $region44
      $region43: #{tpu_custom_call.1} parent=5 // pred_region
        %s247 = ssub.s32 %s19, 1
        %s248 = sand.u32 %s53, 1
        %s249 = scalar_lea.sflag [#allocation5], %s248
        %s250 = sand.u32 %s53, 1
        %s251 = smul.addr %s250, 64
        %s252 = scalar_lea.vmem [#allocation4], %s251
        // Predicated region
        $region45: #{tpu_custom_call.1} parent=43 // pred_check
          %p253 = pneg %p66
        $region46: #{tpu_custom_call.1} parent=43 // pred_check_branch
          %255 = sbr.rel (%p253) target = $region48
        $region47: #{tpu_custom_call.1} parent=43 // pred_region
          %256 = dma.done %s249, 1024
        $region48: #{tpu_custom_call.1} parent=43 // pred_fallthru
          _
        // Predicated region
        $region49: #{tpu_custom_call.1} parent=43 // pred_check
          %p257 = pneg %p129
        $region50: #{tpu_custom_call.1} parent=43 // pred_check_branch
          %259 = sbr.rel (%p257) target = $region52
        $region51: #{tpu_custom_call.1} parent=43 // pred_region
          %260 = dma.done [#allocation8], 768
        $region52: #{tpu_custom_call.1} parent=43 // pred_fallthru
          _
        %p261 = pneg %p40
        %p262 = pneg %p37
        %s263 = sand.u32 %s53, 1
        %s264 = scalar_lea.sflag [#allocation5], %s263
        %s265 = sand.u32 %s53, 1
        %s266 = smul.addr %s265, 64
        %s267 = scalar_lea.vmem [#allocation4], %s266
        %p268 = pneg %p66
        %p269 = pneg %p63
        %p270 = pneg %p87
        %p271 = pneg %p84
        %p272 = pneg %p108
        %p273 = pneg %p105
        %p274 = pneg %p129
        %p275 = pneg %p126
        %p276 = pneg %p150
        %p277 = pneg %p147
        %p278 = pneg %p176
        %p279 = pneg %p173
        %s280 = sand.u32 %s163, 1
        %s281 = scalar_lea.sflag [#allocation6], %s280
        %s282 = sand.u32 %s163, 1
        %s283 = smul.addr %s282, 64
        %s284 = scalar_lea.vmem [#allocation9], %s283
        %v286 = vld [vmem:[%s0] sm:$0xff]
        %v287 = vld [vmem:[%s0 + $0x8] sm:$0x11]
        %288 = vst [vmem:[#allocation2] sm:$0xf] 0
        %289 = vst [vmem:[#allocation2 + $0x10] sm:$0xf] 0
        %290 = vst [vmem:[#allocation2 + $0x20] sm:$0xf] 0
        %291 = vst [vmem:[#allocation2 + $0x30] sm:$0xf] 0
        %292 = vst [vmem:[#allocation2 + $0xc] sm:$0xf] 0
        %293 = vst [vmem:[#allocation2 + $0x1c] sm:$0xf] 0
        %294 = vst [vmem:[#allocation2 + $0x2c] sm:$0xf] 0
        %295 = vst [vmem:[#allocation2 + $0x3c] sm:$0xf] 0
        %v296 = vld [vmem:[%s252] sm:$0xff]
        %v297 = vld [vmem:[%s252 + $0x8] sm:$0xff]
        %v298 = vld [vmem:[%s252 + $0x10] sm:$0xff]
        %v299 = vld [vmem:[%s252 + $0x18] sm:$0xff]
        %v300 = vld [vmem:[%s252 + $0x20] sm:$0xff]
        %v301 = vld [vmem:[%s252 + $0x28] sm:$0xff]
        %v302 = vld [vmem:[%s252 + $0x30] sm:$0xff]
        %v303 = vld [vmem:[%s252 + $0x38] sm:$0xff]
        %v304 = vpack.c.bf16 %v298, %v296
        %v305 = vpack.c.bf16 %v299, %v297
        %v306 = vpack.c.bf16 %v302, %v300
        %v307 = vpack.c.bf16 %v303, %v301
        %v312 = vunpack.c.l.b16 %v304
        %v313 = vunpack.c.l.b16 %v305
        %v314 = vunpack.c.h.b16 %v304
        %v315 = vunpack.c.h.b16 %v305
        %v316 = vunpack.c.l.b16 %v306
        %v317 = vunpack.c.l.b16 %v307
        %v318 = vunpack.c.h.b16 %v306
        %v319 = vunpack.c.h.b16 %v307
        %v320 = vpack.c.b16 %v313, %v312
        %v321 = vpack.c.b16 %v315, %v314
        %v322 = vpack.c.b16 %v317, %v316
        %v323 = vpack.c.b16 %v319, %v318
        %328 = vst [vmem:[#allocation2 + $0x4] sm:$0xff] %v320
        %329 = vst [vmem:[#allocation2 + $0x14] sm:$0xff] %v321
        %330 = vst [vmem:[#allocation2 + $0x24] sm:$0xff] %v322
        %331 = vst [vmem:[#allocation2 + $0x34] sm:$0xff] %v323
        %v332 = vld [vmem:[#allocation2] sm:$0xff]
        %v333 = vld [vmem:[#allocation2 + $0x8] sm:$0xf]
        %v334 = vld [vmem:[#allocation2 + $0x10] sm:$0xff]
        %v335 = vld [vmem:[#allocation2 + $0x18] sm:$0xf]
        %v336 = vld [vmem:[#allocation2 + $0x20] sm:$0xff]
        %v337 = vld [vmem:[#allocation2 + $0x28] sm:$0xf]
        %v338 = vld [vmem:[#allocation2 + $0x30] sm:$0xff]
        %v339 = vld [vmem:[#allocation2 + $0x38] sm:$0xf]
        %v341 = vunpack.c.l.b16 %v286
        %v342 = vunpack.c.h.b16 %v286
        %v343 = vpack.c.b16 %v341, %v341
        %v344 = vpack.c.b16 %v342, %v342
        %v346 = vpack.i.b16 %v343, %v343
        %v348 = vlaneseq
        %v349 = vshrl.u32 %v348, 7
        %v350 = vsub.s32 0, %v349
        %v351 = vrot.slane %v346, %v350
        %v353 = vpack.i.b16 %v344, %v344
        %v355 = vlaneseq
        %v356 = vshrl.u32 %v355, 7
        %v357 = vsub.s32 0, %v356
        %v358 = vrot.slane %v353, %v357
        %v361 = vunpack.c.l.b16 %v351
        %v362 = vunpack.c.l.b16 %v358
        %v363 = vpack.c.b16 %v362, %v361
        %364 = vrot.lane.b32.xlu0 %v363, 111
        %v365 = vpop.permute.xlu0 %364
        %v366 = vrot.slane %v365, 4
        %vm367 = vcmask 908288
        %v368 = vsel %vm367, %v366, %v365
        %v371 = vmul.bf16 %v332, %v368
        %v372 = vmul.bf16 %v333, %v366
        %v373 = vmul.bf16 %v334, %v368
        %v374 = vmul.bf16 %v335, %v366
        %v375 = vmul.bf16 %v336, %v368
        %v376 = vmul.bf16 %v337, %v366
        %v377 = vmul.bf16 %v338, %v368
        %v378 = vmul.bf16 %v339, %v366
        %v379 = vshrl.u32 %v343, 16
        %v380 = vpack.i.b16 %v379, %v379
        %v382 = vlaneseq
        %v383 = vshrl.u32 %v382, 7
        %v384 = vsub.s32 0, %v383
        %v385 = vrot.slane %v380, %v384
        %v386 = vshrl.u32 %v344, 16
        %v387 = vpack.i.b16 %v386, %v386
        %v389 = vlaneseq
        %v390 = vshrl.u32 %v389, 7
        %v391 = vsub.s32 0, %v390
        %v392 = vrot.slane %v387, %v391
        %v395 = vunpack.c.l.b16 %v385
        %v396 = vunpack.c.l.b16 %v392
        %v397 = vpack.c.b16 %v396, %v395
        %398 = vrot.lane.b32.xlu0 %v397, 112
        %v399 = vpop.permute.xlu0 %398
        %v400 = vrot.slane %v399, 4
        %vm401 = vcmask 916480
        %v402 = vsel %vm401, %v400, %v399
        %v405 = vmul.bf16 %v332, %v402
        %v406 = vmul.bf16 %v333, %v400
        %v407 = vmul.bf16 %v334, %v402
        %v408 = vmul.bf16 %v335, %v400
        %v409 = vmul.bf16 %v336, %v402
        %v410 = vmul.bf16 %v337, %v400
        %v411 = vmul.bf16 %v338, %v402
        %v412 = vmul.bf16 %v339, %v400
        %v413 = vlaneseq
        %v414 = vshrl.u32 %v413, 7
        %v415 = vsub.s32 1, %v414
        %v416 = vrot.slane %v346, %v415
        %v417 = vlaneseq
        %v418 = vshrl.u32 %v417, 7
        %v419 = vsub.s32 1, %v418
        %v420 = vrot.slane %v353, %v419
        %v423 = vunpack.c.l.b16 %v416
        %v424 = vunpack.c.l.b16 %v420
        %v425 = vpack.c.b16 %v424, %v423
        %426 = vrot.lane.b32.xlu0 %v425, 113
        %v427 = vpop.permute.xlu0 %426
        %v428 = vrot.slane %v427, 4
        %vm429 = vcmask 924672
        %v430 = vsel %vm429, %v428, %v427
        %v433 = vmul.bf16 %v332, %v430
        %v434 = vmul.bf16 %v333, %v428
        %v435 = vmul.bf16 %v334, %v430
        %v436 = vmul.bf16 %v335, %v428
        %v437 = vmul.bf16 %v336, %v430
        %v438 = vmul.bf16 %v337, %v428
        %v439 = vmul.bf16 %v338, %v430
        %v440 = vmul.bf16 %v339, %v428
        %v441 = vlaneseq
        %v442 = vshrl.u32 %v441, 7
        %v443 = vsub.s32 1, %v442
        %v444 = vrot.slane %v380, %v443
        %v445 = vlaneseq
        %v446 = vshrl.u32 %v445, 7
        %v447 = vsub.s32 1, %v446
        %v448 = vrot.slane %v387, %v447
        %v451 = vunpack.c.l.b16 %v444
        %v452 = vunpack.c.l.b16 %v448
        %v453 = vpack.c.b16 %v452, %v451
        %454 = vrot.lane.b32.xlu0 %v453, 127
        %v455 = vpop.permute.xlu0 %454
        %v456 = vrot.slane %v455, 4
        %vm457 = vcmask 1039360
        %v458 = vsel %vm457, %v456, %v455
        %v461 = vmul.bf16 %v332, %v458
        %v462 = vmul.bf16 %v333, %v456
        %v463 = vmul.bf16 %v334, %v458
        %v464 = vmul.bf16 %v335, %v456
        %v465 = vmul.bf16 %v336, %v458
        %v466 = vmul.bf16 %v337, %v456
        %v467 = vmul.bf16 %v338, %v458
        %v468 = vmul.bf16 %v339, %v456
        %v469 = vld [vmem:[#allocation2 + $0x4] sm:$0xff]
        %v470 = vld [vmem:[#allocation2 + $0x14] sm:$0xff]
        %v471 = vld [vmem:[#allocation2 + $0x24] sm:$0xff]
        %v472 = vld [vmem:[#allocation2 + $0x34] sm:$0xff]
        %v473 = vlaneseq
        %v474 = vshrl.u32 %v473, 7
        %v475 = vsub.s32 2, %v474
        %v476 = vrot.slane %v346, %v475
        %v477 = vlaneseq
        %v478 = vshrl.u32 %v477, 7
        %v479 = vsub.s32 2, %v478
        %v480 = vrot.slane %v353, %v479
        %v483 = vunpack.c.l.b16 %v476
        %v484 = vunpack.c.l.b16 %v480
        %v485 = vpack.c.b16 %v484, %v483
        %v487 = vmul.bf16 %v469, %v485
        %v488 = vmul.bf16 %v470, %v485
        %v489 = vmul.bf16 %v471, %v485
        %v490 = vmul.bf16 %v472, %v485
        %v491 = vld [vmem:[#allocation2 + $0x4] sm:$0xff]
        %v492 = vld [vmem:[#allocation2 + $0xc] sm:$0xf]
        %v493 = vld [vmem:[#allocation2 + $0x14] sm:$0xff]
        %v494 = vld [vmem:[#allocation2 + $0x1c] sm:$0xf]
        %v495 = vld [vmem:[#allocation2 + $0x24] sm:$0xff]
        %v496 = vld [vmem:[#allocation2 + $0x2c] sm:$0xf]
        %v497 = vld [vmem:[#allocation2 + $0x34] sm:$0xff]
        %v498 = vld [vmem:[#allocation2 + $0x3c] sm:$0xf]
        %v499 = vlaneseq
        %v500 = vshrl.u32 %v499, 7
        %v501 = vsub.s32 2, %v500
        %v502 = vrot.slane %v380, %v501
        %v503 = vlaneseq
        %v504 = vshrl.u32 %v503, 7
        %v505 = vsub.s32 2, %v504
        %v506 = vrot.slane %v387, %v505
        %v509 = vunpack.c.l.b16 %v502
        %v510 = vunpack.c.l.b16 %v506
        %v511 = vpack.c.b16 %v510, %v509
        %512 = vrot.lane.b32.xlu0 %v511, 1
        %v513 = vpop.permute.xlu0 %512
        %v514 = vrot.slane %v513, 4
        %vm515 = vcmask 7168
        %v516 = vsel %vm515, %v514, %v513
        %v519 = vmul.bf16 %v491, %v516
        %v520 = vmul.bf16 %v492, %v514
        %v521 = vmul.bf16 %v493, %v516
        %v522 = vmul.bf16 %v494, %v514
        %v523 = vmul.bf16 %v495, %v516
        %v524 = vmul.bf16 %v496, %v514
        %v525 = vmul.bf16 %v497, %v516
        %v526 = vmul.bf16 %v498, %v514
        %v527 = vlaneseq
        %v528 = vshrl.u32 %v527, 7
        %v529 = vsub.s32 3, %v528
        %v530 = vrot.slane %v346, %v529
        %v531 = vlaneseq
        %v532 = vshrl.u32 %v531, 7
        %v533 = vsub.s32 3, %v532
        %v534 = vrot.slane %v353, %v533
        %v537 = vunpack.c.l.b16 %v530
        %v538 = vunpack.c.l.b16 %v534
        %v539 = vpack.c.b16 %v538, %v537
        %540 = vrot.lane.b32.xlu0 %v539, 15
        %v541 = vpop.permute.xlu0 %540
        %v542 = vrot.slane %v541, 4
        %vm543 = vcmask 121856
        %v544 = vsel %vm543, %v542, %v541
        %v547 = vmul.bf16 %v491, %v544
        %v548 = vmul.bf16 %v492, %v542
        %v549 = vmul.bf16 %v493, %v544
        %v550 = vmul.bf16 %v494, %v542
        %v551 = vmul.bf16 %v495, %v544
        %v552 = vmul.bf16 %v496, %v542
        %v553 = vmul.bf16 %v497, %v544
        %v554 = vmul.bf16 %v498, %v542
        %v555 = vlaneseq
        %v556 = vshrl.u32 %v555, 7
        %v557 = vsub.s32 3, %v556
        %v558 = vrot.slane %v380, %v557
        %v559 = vlaneseq
        %v560 = vshrl.u32 %v559, 7
        %v561 = vsub.s32 3, %v560
        %v562 = vrot.slane %v387, %v561
        %v565 = vunpack.c.l.b16 %v558
        %v566 = vunpack.c.l.b16 %v562
        %v567 = vpack.c.b16 %v566, %v565
        %568 = vrot.lane.b32.xlu0 %v567, 16
        %v569 = vpop.permute.xlu0 %568
        %v570 = vrot.slane %v569, 4
        %vm571 = vcmask 130048
        %v572 = vsel %vm571, %v570, %v569
        %v575 = vmul.bf16 %v491, %v572
        %v576 = vmul.bf16 %v492, %v570
        %v577 = vmul.bf16 %v493, %v572
        %v578 = vmul.bf16 %v494, %v570
        %v579 = vmul.bf16 %v495, %v572
        %v580 = vmul.bf16 %v496, %v570
        %v581 = vmul.bf16 %v497, %v572
        %v582 = vmul.bf16 %v498, %v570
        %v584 = vunpack.c.l.b16 %v287
        %v585 = vunpack.c.h.b16 %v287
        %v586 = vpack.c.b16 %v584, %v584
        %v587 = vpack.c.b16 %v585, %v585
        %v589 = vpack.i.b16 %v586, %v586
        %v591 = vlaneseq
        %v592 = vshrl.u32 %v591, 7
        %v593 = vsub.s32 0, %v592
        %v594 = vrot.slane %v589, %v593
        %v596 = vpack.i.b16 %v587, %v587
        %v598 = vlaneseq
        %v599 = vshrl.u32 %v598, 7
        %v600 = vsub.s32 0, %v599
        %v601 = vrot.slane %v596, %v600
        %v604 = vunpack.c.l.b16 %v594
        %v605 = vunpack.c.l.b16 %v601
        %v606 = vpack.c.b16 %v605, %v604
        %607 = vrot.lane.b32.xlu0 %v606, 17
        %v608 = vpop.permute.xlu0 %607
        %v609 = vrot.slane %v608, 4
        %vm610 = vcmask 138240
        %v611 = vsel %vm610, %v609, %v608
        %v614 = vmul.bf16 %v491, %v611
        %v615 = vmul.bf16 %v492, %v609
        %v616 = vmul.bf16 %v493, %v611
        %v617 = vmul.bf16 %v494, %v609
        %v618 = vmul.bf16 %v495, %v611
        %v619 = vmul.bf16 %v496, %v609
        %v620 = vmul.bf16 %v497, %v611
        %v621 = vmul.bf16 %v498, %v609
        %v630 = vunpack.c.l.b16 %v371
        %v631 = vunpack.c.h.b16 %v371
        %v632 = vunpack.c.l.b16 %v372
        %v633 = vunpack.c.l.b16 %v373
        %v634 = vunpack.c.h.b16 %v373
        %v635 = vunpack.c.l.b16 %v374
        %v636 = vunpack.c.l.b16 %v375
        %v637 = vunpack.c.h.b16 %v375
        %v638 = vunpack.c.l.b16 %v376
        %v639 = vunpack.c.l.b16 %v377
        %v640 = vunpack.c.h.b16 %v377
        %v641 = vunpack.c.l.b16 %v378
        %v642 = vpack.c.b16 %v633, %v630
        %v643 = vpack.c.b16 %v634, %v631
        %v644 = vpack.c.b16 %v635, %v632
        %v645 = vpack.c.b16 %v639, %v636
        %v646 = vpack.c.b16 %v640, %v637
        %v647 = vpack.c.b16 %v641, %v638
        %v656 = vunpack.c.l.b16 %v405
        %v657 = vunpack.c.h.b16 %v405
        %v658 = vunpack.c.l.b16 %v406
        %v659 = vunpack.c.l.b16 %v407
        %v660 = vunpack.c.h.b16 %v407
        %v661 = vunpack.c.l.b16 %v408
        %v662 = vunpack.c.l.b16 %v409
        %v663 = vunpack.c.h.b16 %v409
        %v664 = vunpack.c.l.b16 %v410
        %v665 = vunpack.c.l.b16 %v411
        %v666 = vunpack.c.h.b16 %v411
        %v667 = vunpack.c.l.b16 %v412
        %v668 = vpack.c.b16 %v659, %v656
        %v669 = vpack.c.b16 %v660, %v657
        %v670 = vpack.c.b16 %v661, %v658
        %v671 = vpack.c.b16 %v665, %v662
        %v672 = vpack.c.b16 %v666, %v663
        %v673 = vpack.c.b16 %v667, %v664
        %674 = vrot.lane.b32.xlu0 %v668, 127
        %v675 = vpop.permute.xlu0 %674
        %676 = vrot.lane.b32.xlu0 %v669, 127
        %v677 = vpop.permute.xlu0 %676
        %678 = vrot.lane.b32.xlu0 %v670, 127
        %v679 = vpop.permute.xlu0 %678
        %680 = vrot.lane.b32.xlu0 %v671, 127
        %v681 = vpop.permute.xlu0 %680
        %682 = vrot.lane.b32.xlu0 %v672, 127
        %v683 = vpop.permute.xlu0 %682
        %684 = vrot.lane.b32.xlu0 %v673, 127
        %v685 = vpop.permute.xlu0 %684
        %v686 = vsel %vm457, %v675, %v677
        %v687 = vsel %vm457, %v677, %v679
        %v688 = vsel %vm457, %v681, %v683
        %v689 = vsel %vm457, %v683, %v685
        %v698 = vunpack.c.l.b16 %v433
        %v699 = vunpack.c.h.b16 %v433
        %v700 = vunpack.c.l.b16 %v434
        %v701 = vunpack.c.l.b16 %v435
        %v702 = vunpack.c.h.b16 %v435
        %v703 = vunpack.c.l.b16 %v436
        %v704 = vunpack.c.l.b16 %v437
        %v705 = vunpack.c.h.b16 %v437
        %v706 = vunpack.c.l.b16 %v438
        %v707 = vunpack.c.l.b16 %v439
        %v708 = vunpack.c.h.b16 %v439
        %v709 = vunpack.c.l.b16 %v440
        %v710 = vpack.c.b16 %v701, %v698
        %v711 = vpack.c.b16 %v702, %v699
        %v712 = vpack.c.b16 %v703, %v700
        %v713 = vpack.c.b16 %v707, %v704
        %v714 = vpack.c.b16 %v708, %v705
        %v715 = vpack.c.b16 %v709, %v706
        %716 = vrot.lane.b32.xlu0 %v710, 126
        %v717 = vpop.permute.xlu0 %716
        %718 = vrot.lane.b32.xlu0 %v711, 126
        %v719 = vpop.permute.xlu0 %718
        %720 = vrot.lane.b32.xlu0 %v712, 126
        %v721 = vpop.permute.xlu0 %720
        %722 = vrot.lane.b32.xlu0 %v713, 126
        %v723 = vpop.permute.xlu0 %722
        %724 = vrot.lane.b32.xlu0 %v714, 126
        %v725 = vpop.permute.xlu0 %724
        %726 = vrot.lane.b32.xlu0 %v715, 126
        %v727 = vpop.permute.xlu0 %726
        %vm728 = vcmask 1031168
        %v729 = vsel %vm728, %v717, %v719
        %v730 = vsel %vm728, %v719, %v721
        %v731 = vsel %vm728, %v723, %v725
        %v732 = vsel %vm728, %v725, %v727
        %v741 = vunpack.c.l.b16 %v461
        %v742 = vunpack.c.h.b16 %v461
        %v743 = vunpack.c.l.b16 %v462
        %v744 = vunpack.c.l.b16 %v463
        %v745 = vunpack.c.h.b16 %v463
        %v746 = vunpack.c.l.b16 %v464
        %v747 = vunpack.c.l.b16 %v465
        %v748 = vunpack.c.h.b16 %v465
        %v749 = vunpack.c.l.b16 %v466
        %v750 = vunpack.c.l.b16 %v467
        %v751 = vunpack.c.h.b16 %v467
        %v752 = vunpack.c.l.b16 %v468
        %v753 = vpack.c.b16 %v744, %v741
        %v754 = vpack.c.b16 %v745, %v742
        %v755 = vpack.c.b16 %v746, %v743
        %v756 = vpack.c.b16 %v750, %v747
        %v757 = vpack.c.b16 %v751, %v748
        %v758 = vpack.c.b16 %v752, %v749
        %759 = vrot.lane.b32.xlu0 %v753, 112
        %v760 = vpop.permute.xlu0 %759
        %761 = vrot.lane.b32.xlu0 %v754, 112
        %v762 = vpop.permute.xlu0 %761
        %763 = vrot.lane.b32.xlu0 %v755, 112
        %v764 = vpop.permute.xlu0 %763
        %765 = vrot.lane.b32.xlu0 %v756, 112
        %v766 = vpop.permute.xlu0 %765
        %767 = vrot.lane.b32.xlu0 %v757, 112
        %v768 = vpop.permute.xlu0 %767
        %769 = vrot.lane.b32.xlu0 %v758, 112
        %v770 = vpop.permute.xlu0 %769
        %v771 = vsel %vm401, %v760, %v762
        %v772 = vsel %vm401, %v762, %v764
        %v773 = vsel %vm401, %v766, %v768
        %v774 = vsel %vm401, %v768, %v770
        %v779 = vunpack.c.l.b16 %v487
        %v780 = vunpack.c.h.b16 %v487
        %v781 = vunpack.c.l.b16 %v488
        %v782 = vunpack.c.h.b16 %v488
        %v783 = vunpack.c.l.b16 %v489
        %v784 = vunpack.c.h.b16 %v489
        %v785 = vunpack.c.l.b16 %v490
        %v786 = vunpack.c.h.b16 %v490
        %v787 = vpack.c.b16 %v781, %v779
        %v788 = vpack.c.b16 %v782, %v780
        %v789 = vpack.c.b16 %v785, %v783
        %v790 = vpack.c.b16 %v786, %v784
        %791 = vrot.lane.b32.xlu0 %v787, 111
        %v792 = vpop.permute.xlu0 %791
        %793 = vrot.lane.b32.xlu0 %v788, 111
        %v794 = vpop.permute.xlu0 %793
        %795 = vrot.lane.b32.xlu0 %v789, 111
        %v796 = vpop.permute.xlu0 %795
        %797 = vrot.lane.b32.xlu0 %v790, 111
        %v798 = vpop.permute.xlu0 %797
        %v799 = vsel %vm367, %v792, %v794
        %v800 = vsel %vm367, %v796, %v798
        %v809 = vunpack.c.l.b16 %v519
        %v810 = vunpack.c.h.b16 %v519
        %v811 = vunpack.c.l.b16 %v520
        %v812 = vunpack.c.l.b16 %v521
        %v813 = vunpack.c.h.b16 %v521
        %v814 = vunpack.c.l.b16 %v522
        %v815 = vunpack.c.l.b16 %v523
        %v816 = vunpack.c.h.b16 %v523
        %v817 = vunpack.c.l.b16 %v524
        %v818 = vunpack.c.l.b16 %v525
        %v819 = vunpack.c.h.b16 %v525
        %v820 = vunpack.c.l.b16 %v526
        %v821 = vpack.c.b16 %v812, %v809
        %v822 = vpack.c.b16 %v813, %v810
        %v823 = vpack.c.b16 %v814, %v811
        %v824 = vpack.c.b16 %v818, %v815
        %v825 = vpack.c.b16 %v819, %v816
        %v826 = vpack.c.b16 %v820, %v817
        %827 = vrot.lane.b32.xlu0 %v821, 110
        %v828 = vpop.permute.xlu0 %827
        %829 = vrot.lane.b32.xlu0 %v822, 110
        %v830 = vpop.permute.xlu0 %829
        %831 = vrot.lane.b32.xlu0 %v823, 110
        %v832 = vpop.permute.xlu0 %831
        %833 = vrot.lane.b32.xlu0 %v824, 110
        %v834 = vpop.permute.xlu0 %833
        %835 = vrot.lane.b32.xlu0 %v825, 110
        %v836 = vpop.permute.xlu0 %835
        %837 = vrot.lane.b32.xlu0 %v826, 110
        %v838 = vpop.permute.xlu0 %837
        %vm839 = vcmask 900096
        %v840 = vsel %vm839, %v828, %v830
        %v841 = vsel %vm839, %v830, %v832
        %v842 = vsel %vm839, %v834, %v836
        %v843 = vsel %vm839, %v836, %v838
        %v852 = vunpack.c.l.b16 %v547
        %v853 = vunpack.c.h.b16 %v547
        %v854 = vunpack.c.l.b16 %v548
        %v855 = vunpack.c.l.b16 %v549
        %v856 = vunpack.c.h.b16 %v549
        %v857 = vunpack.c.l.b16 %v550
        %v858 = vunpack.c.l.b16 %v551
        %v859 = vunpack.c.h.b16 %v551
        %v860 = vunpack.c.l.b16 %v552
        %v861 = vunpack.c.l.b16 %v553
        %v862 = vunpack.c.h.b16 %v553
        %v863 = vunpack.c.l.b16 %v554
        %v864 = vpack.c.b16 %v855, %v852
        %v865 = vpack.c.b16 %v856, %v853
        %v866 = vpack.c.b16 %v857, %v854
        %v867 = vpack.c.b16 %v861, %v858
        %v868 = vpack.c.b16 %v862, %v859
        %v869 = vpack.c.b16 %v863, %v860
        %870 = vrot.lane.b32.xlu0 %v864, 96
        %v871 = vpop.permute.xlu0 %870
        %872 = vrot.lane.b32.xlu0 %v865, 96
        %v873 = vpop.permute.xlu0 %872
        %874 = vrot.lane.b32.xlu0 %v866, 96
        %v875 = vpop.permute.xlu0 %874
        %876 = vrot.lane.b32.xlu0 %v867, 96
        %v877 = vpop.permute.xlu0 %876
        %878 = vrot.lane.b32.xlu0 %v868, 96
        %v879 = vpop.permute.xlu0 %878
        %880 = vrot.lane.b32.xlu0 %v869, 96
        %v881 = vpop.permute.xlu0 %880
        %vm882 = vcmask 785408
        %v883 = vsel %vm882, %v871, %v873
        %v884 = vsel %vm882, %v873, %v875
        %v885 = vsel %vm882, %v877, %v879
        %v886 = vsel %vm882, %v879, %v881
        %v895 = vunpack.c.l.b16 %v575
        %v896 = vunpack.c.h.b16 %v575
        %v897 = vunpack.c.l.b16 %v576
        %v898 = vunpack.c.l.b16 %v577
        %v899 = vunpack.c.h.b16 %v577
        %v900 = vunpack.c.l.b16 %v578
        %v901 = vunpack.c.l.b16 %v579
        %v902 = vunpack.c.h.b16 %v579
        %v903 = vunpack.c.l.b16 %v580
        %v904 = vunpack.c.l.b16 %v581
        %v905 = vunpack.c.h.b16 %v581
        %v906 = vunpack.c.l.b16 %v582
        %v907 = vpack.c.b16 %v898, %v895
        %v908 = vpack.c.b16 %v899, %v896
        %v909 = vpack.c.b16 %v900, %v897
        %v910 = vpack.c.b16 %v904, %v901
        %v911 = vpack.c.b16 %v905, %v902
        %v912 = vpack.c.b16 %v906, %v903
        %913 = vrot.lane.b32.xlu0 %v907, 95
        %v914 = vpop.permute.xlu0 %913
        %915 = vrot.lane.b32.xlu0 %v908, 95
        %v916 = vpop.permute.xlu0 %915
        %917 = vrot.lane.b32.xlu0 %v909, 95
        %v918 = vpop.permute.xlu0 %917
        %919 = vrot.lane.b32.xlu0 %v910, 95
        %v920 = vpop.permute.xlu0 %919
        %921 = vrot.lane.b32.xlu0 %v911, 95
        %v922 = vpop.permute.xlu0 %921
        %923 = vrot.lane.b32.xlu0 %v912, 95
        %v924 = vpop.permute.xlu0 %923
        %vm925 = vcmask 777216
        %v926 = vsel %vm925, %v914, %v916
        %v927 = vsel %vm925, %v916, %v918
        %v928 = vsel %vm925, %v920, %v922
        %v929 = vsel %vm925, %v922, %v924
        %v938 = vunpack.c.l.b16 %v614
        %v939 = vunpack.c.h.b16 %v614
        %v940 = vunpack.c.l.b16 %v615
        %v941 = vunpack.c.l.b16 %v616
        %v942 = vunpack.c.h.b16 %v616
        %v943 = vunpack.c.l.b16 %v617
        %v944 = vunpack.c.l.b16 %v618
        %v945 = vunpack.c.h.b16 %v618
        %v946 = vunpack.c.l.b16 %v619
        %v947 = vunpack.c.l.b16 %v620
        %v948 = vunpack.c.h.b16 %v620
        %v949 = vunpack.c.l.b16 %v621
        %v950 = vpack.c.b16 %v941, %v938
        %v951 = vpack.c.b16 %v942, %v939
        %v952 = vpack.c.b16 %v943, %v940
        %v953 = vpack.c.b16 %v947, %v944
        %v954 = vpack.c.b16 %v948, %v945
        %v955 = vpack.c.b16 %v949, %v946
        %956 = vrot.lane.b32.xlu0 %v950, 94
        %v957 = vpop.permute.xlu0 %956
        %958 = vrot.lane.b32.xlu0 %v951, 94
        %v959 = vpop.permute.xlu0 %958
        %960 = vrot.lane.b32.xlu0 %v952, 94
        %v961 = vpop.permute.xlu0 %960
        %962 = vrot.lane.b32.xlu0 %v953, 94
        %v963 = vpop.permute.xlu0 %962
        %964 = vrot.lane.b32.xlu0 %v954, 94
        %v965 = vpop.permute.xlu0 %964
        %966 = vrot.lane.b32.xlu0 %v955, 94
        %v967 = vpop.permute.xlu0 %966
        %vm968 = vcmask 769024
        %v969 = vsel %vm968, %v957, %v959
        %v970 = vsel %vm968, %v959, %v961
        %v971 = vsel %vm968, %v963, %v965
        %v972 = vsel %vm968, %v965, %v967
        %v973 = vld [vmem:[%s2] sm:$0xff]
        %v974 = vld [vmem:[%s2 + $0x8] sm:$0xf]
        %v975 = vld [vmem:[%s2 + $0xc] sm:$0xff]
        %v976 = vld [vmem:[%s2 + $0x14] sm:$0xf]
        %v977 = vld [vmem:[%s2 + $0x18] sm:$0xff]
        %v978 = vld [vmem:[%s2 + $0x20] sm:$0xf]
        %v979 = vld [vmem:[%s2 + $0x24] sm:$0xff]
        %v980 = vld [vmem:[%s2 + $0x2c] sm:$0xf]
        %v981 = vld [vmem:[%s3] sm:$0xff]
        %v982 = vld [vmem:[%s3 + $0x8] sm:$0xff]
        %v983 = vld [vmem:[%s3 + $0x10] sm:$0xff]
        %v984 = vld [vmem:[%s3 + $0x18] sm:$0xff]
        %986 = vset.pattern.permute.xlu0 0
        %987 = vperm.xlu0 %986, %v981
        %v988 = vpop.permute.xlu0 %987
        %991 = vset.pattern.permute.xlu0 0
        %992 = vperm.xlu0 %991, %v982
        %v993 = vpop.permute.xlu0 %992
        %996 = vset.pattern.permute.xlu0 0
        %997 = vperm.xlu0 %996, %v983
        %v998 = vpop.permute.xlu0 %997
        %1001 = vset.pattern.permute.xlu0 0
        %1002 = vperm.xlu0 %1001, %v984
        %v1003 = vpop.permute.xlu0 %1002
        %v1013 = vunpack.c.l.b16 %v973
        %v1014 = vunpack.c.h.b16 %v973
        %v1015 = vunpack.c.l.b16 %v974
        %v1016 = vunpack.c.l.b16 %v975
        %v1017 = vunpack.c.h.b16 %v975
        %v1018 = vunpack.c.l.b16 %v976
        %v1019 = vunpack.c.l.b16 %v977
        %v1020 = vunpack.c.h.b16 %v977
        %v1021 = vunpack.c.l.b16 %v978
        %v1022 = vunpack.c.l.b16 %v979
        %v1023 = vunpack.c.h.b16 %v979
        %v1024 = vunpack.c.l.b16 %v980
        %v1025 = vpack.c.b16 %v1016, %v1013
        %v1026 = vpack.c.b16 %v1017, %v1014
        %v1027 = vpack.c.b16 %v1018, %v1015
        %v1028 = vpack.c.b16 %v1022, %v1019
        %v1029 = vpack.c.b16 %v1023, %v1020
        %v1030 = vpack.c.b16 %v1024, %v1021
        %1035 = vrot.lane.b32.xlu0 %v642, 17
        %v1036 = vpop.permute.xlu0 %1035
        %1037 = vrot.lane.b32.xlu0 %v643, 17
        %v1038 = vpop.permute.xlu0 %1037
        %1039 = vrot.lane.b32.xlu0 %v644, 17
        %v1040 = vpop.permute.xlu0 %1039
        %1041 = vrot.lane.b32.xlu0 %v645, 17
        %v1042 = vpop.permute.xlu0 %1041
        %1043 = vrot.lane.b32.xlu0 %v646, 17
        %v1044 = vpop.permute.xlu0 %1043
        %1045 = vrot.lane.b32.xlu0 %v647, 17
        %v1046 = vpop.permute.xlu0 %1045
        %1047 = vrot.lane.b32.xlu0 %v686, 17
        %v1048 = vpop.permute.xlu0 %1047
        %1049 = vrot.lane.b32.xlu0 %v687, 17
        %v1050 = vpop.permute.xlu0 %1049
        %1051 = vrot.lane.b32.xlu0 %v679, 17
        %v1052 = vpop.permute.xlu0 %1051
        %1053 = vrot.lane.b32.xlu0 %v688, 17
        %v1054 = vpop.permute.xlu0 %1053
        %1055 = vrot.lane.b32.xlu0 %v689, 17
        %v1056 = vpop.permute.xlu0 %1055
        %1057 = vrot.lane.b32.xlu0 %v685, 17
        %v1058 = vpop.permute.xlu0 %1057
        %1059 = vrot.lane.b32.xlu0 %v729, 17
        %v1060 = vpop.permute.xlu0 %1059
        %1061 = vrot.lane.b32.xlu0 %v730, 17
        %v1062 = vpop.permute.xlu0 %1061
        %1063 = vrot.lane.b32.xlu0 %v721, 17
        %v1064 = vpop.permute.xlu0 %1063
        %1065 = vrot.lane.b32.xlu0 %v731, 17
        %v1066 = vpop.permute.xlu0 %1065
        %1067 = vrot.lane.b32.xlu0 %v732, 17
        %v1068 = vpop.permute.xlu0 %1067
        %1069 = vrot.lane.b32.xlu0 %v727, 17
        %v1070 = vpop.permute.xlu0 %1069
        %1071 = vrot.lane.b32.xlu0 %v771, 17
        %v1072 = vpop.permute.xlu0 %1071
        %1073 = vrot.lane.b32.xlu0 %v772, 17
        %v1074 = vpop.permute.xlu0 %1073
        %1075 = vrot.lane.b32.xlu0 %v764, 17
        %v1076 = vpop.permute.xlu0 %1075
        %1077 = vrot.lane.b32.xlu0 %v773, 17
        %v1078 = vpop.permute.xlu0 %1077
        %1079 = vrot.lane.b32.xlu0 %v774, 17
        %v1080 = vpop.permute.xlu0 %1079
        %1081 = vrot.lane.b32.xlu0 %v770, 17
        %v1082 = vpop.permute.xlu0 %1081
        %1083 = vrot.lane.b32.xlu0 %v792, 17
        %v1084 = vpop.permute.xlu0 %1083
        %1085 = vrot.lane.b32.xlu0 %v799, 17
        %v1086 = vpop.permute.xlu0 %1085
        %1087 = vrot.lane.b32.xlu0 %v794, 17
        %v1088 = vpop.permute.xlu0 %1087
        %1089 = vrot.lane.b32.xlu0 %v796, 17
        %v1090 = vpop.permute.xlu0 %1089
        %1091 = vrot.lane.b32.xlu0 %v800, 17
        %v1092 = vpop.permute.xlu0 %1091
        %1093 = vrot.lane.b32.xlu0 %v798, 17
        %v1094 = vpop.permute.xlu0 %1093
        %1095 = vrot.lane.b32.xlu0 %v828, 17
        %v1096 = vpop.permute.xlu0 %1095
        %1097 = vrot.lane.b32.xlu0 %v840, 17
        %v1098 = vpop.permute.xlu0 %1097
        %1099 = vrot.lane.b32.xlu0 %v841, 17
        %v1100 = vpop.permute.xlu0 %1099
        %1101 = vrot.lane.b32.xlu0 %v834, 17
        %v1102 = vpop.permute.xlu0 %1101
        %1103 = vrot.lane.b32.xlu0 %v842, 17
        %v1104 = vpop.permute.xlu0 %1103
        %1105 = vrot.lane.b32.xlu0 %v843, 17
        %v1106 = vpop.permute.xlu0 %1105
        %1107 = vrot.lane.b32.xlu0 %v871, 17
        %v1108 = vpop.permute.xlu0 %1107
        %1109 = vrot.lane.b32.xlu0 %v883, 17
        %v1110 = vpop.permute.xlu0 %1109
        %1111 = vrot.lane.b32.xlu0 %v884, 17
        %v1112 = vpop.permute.xlu0 %1111
        %1113 = vrot.lane.b32.xlu0 %v877, 17
        %v1114 = vpop.permute.xlu0 %1113
        %1115 = vrot.lane.b32.xlu0 %v885, 17
        %v1116 = vpop.permute.xlu0 %1115
        %1117 = vrot.lane.b32.xlu0 %v886, 17
        %v1118 = vpop.permute.xlu0 %1117
        %1119 = vrot.lane.b32.xlu0 %v914, 17
        %v1120 = vpop.permute.xlu0 %1119
        %1121 = vrot.lane.b32.xlu0 %v926, 17
        %v1122 = vpop.permute.xlu0 %1121
        %1123 = vrot.lane.b32.xlu0 %v927, 17
        %v1124 = vpop.permute.xlu0 %1123
        %1125 = vrot.lane.b32.xlu0 %v920, 17
        %v1126 = vpop.permute.xlu0 %1125
        %1127 = vrot.lane.b32.xlu0 %v928, 17
        %v1128 = vpop.permute.xlu0 %1127
        %1129 = vrot.lane.b32.xlu0 %v929, 17
        %v1130 = vpop.permute.xlu0 %1129
        %1131 = vrot.lane.b32.xlu0 %v957, 17
        %v1132 = vpop.permute.xlu0 %1131
        %1133 = vrot.lane.b32.xlu0 %v969, 17
        %v1134 = vpop.permute.xlu0 %1133
        %1135 = vrot.lane.b32.xlu0 %v970, 17
        %v1136 = vpop.permute.xlu0 %1135
        %1137 = vrot.lane.b32.xlu0 %v963, 17
        %v1138 = vpop.permute.xlu0 %1137
        %1139 = vrot.lane.b32.xlu0 %v971, 17
        %v1140 = vpop.permute.xlu0 %1139
        %1141 = vrot.lane.b32.xlu0 %v972, 17
        %v1142 = vpop.permute.xlu0 %1141
        %v1143 = vsel %vm610, %v1036, %v1038
        %v1144 = vsel %vm610, %v1038, %v1040
        %v1145 = vsel %vm610, %v1042, %v1044
        %v1146 = vsel %vm610, %v1044, %v1046
        %v1147 = vsel %vm610, %v1048, %v1050
        %v1148 = vsel %vm610, %v1050, %v1052
        %v1149 = vsel %vm610, %v1054, %v1056
        %v1150 = vsel %vm610, %v1056, %v1058
        %v1151 = vsel %vm610, %v1060, %v1062
        %v1152 = vsel %vm610, %v1062, %v1064
        %v1153 = vsel %vm610, %v1066, %v1068
        %v1154 = vsel %vm610, %v1068, %v1070
        %v1155 = vsel %vm610, %v1072, %v1074
        %v1156 = vsel %vm610, %v1074, %v1076
        %v1157 = vsel %vm610, %v1078, %v1080
        %v1158 = vsel %vm610, %v1080, %v1082
        %v1159 = vsel %vm610, %v1084, %v1086
        %v1160 = vsel %vm610, %v1086, %v1088
        %v1161 = vsel %vm610, %v1090, %v1092
        %v1162 = vsel %vm610, %v1092, %v1094
        %v1163 = vsel %vm610, %v1096, %v1098
        %v1164 = vsel %vm610, %v1098, %v1100
        %v1165 = vsel %vm610, %v1102, %v1104
        %v1166 = vsel %vm610, %v1104, %v1106
        %v1167 = vsel %vm610, %v1108, %v1110
        %v1168 = vsel %vm610, %v1110, %v1112
        %v1169 = vsel %vm610, %v1114, %v1116
        %v1170 = vsel %vm610, %v1116, %v1118
        %v1171 = vsel %vm610, %v1120, %v1122
        %v1172 = vsel %vm610, %v1122, %v1124
        %v1173 = vsel %vm610, %v1126, %v1128
        %v1174 = vsel %vm610, %v1128, %v1130
        %v1175 = vsel %vm610, %v1132, %v1134
        %v1176 = vsel %vm610, %v1134, %v1136
        %v1177 = vsel %vm610, %v1138, %v1140
        %v1178 = vsel %vm610, %v1140, %v1142
        %vm1215 = vcmask 261120
        %v1217 = vsel %vm1215, %v1027, 0
        %v1220 = vsel %vm1215, %v1030, 0
        %1222 = vmatprep.subr.bf16.mxu0 %v1158
        %1223 = vmatpush1.bf16.msra.mxu0 %v1157
        %1224 = vmatprep.subr.bf16.mxu0 %v1156
        %1225 = vmatpush1.bf16.msra.mxu0 %v1155
        %1226 = vmatprep.subr.bf16.mxu0 %v1154
        %1227 = vmatpush1.bf16.msra.mxu0 %v1153
        %1228 = vmatprep.subr.bf16.mxu0 %v1152
        %1229 = vmatpush1.bf16.msra.mxu0 %v1151
        %1230 = vmatprep.subr.bf16.mxu0 %v1150
        %1231 = vmatpush1.bf16.msra.mxu0 %v1149
        %1232 = vmatprep.subr.bf16.mxu0 %v1148
        %1233 = vmatpush1.bf16.msra.mxu0 %v1147
        %1234 = vmatprep.subr.bf16.mxu0 %v1146
        %1235 = vmatpush1.bf16.msra.mxu0 %v1145
        %1236 = vmatprep.subr.bf16.mxu0 %v1144
        %1237 = vmatpush1.bf16.msra.mxu0 %v1143
        %1238 = vmatprep.subr.bf16.mxu0 %v1174
        %1239 = vmatpush2.bf16.msra.mxu0 %v1173
        %1240 = vmatprep.subr.bf16.mxu0 %v1172
        %1241 = vmatpush2.bf16.msra.mxu0 %v1171
        %1242 = vmatprep.subr.bf16.mxu0 %v1170
        %1243 = vmatpush2.bf16.msra.mxu0 %v1169
        %1244 = vmatprep.subr.bf16.mxu0 %v1168
        %1245 = vmatpush2.bf16.msra.mxu0 %v1167
        %1246 = vmatprep.subr.bf16.mxu0 %v1166
        %1247 = vmatpush2.bf16.msra.mxu0 %v1165
        %1248 = vmatprep.subr.bf16.mxu0 %v1164
        %1249 = vmatpush2.bf16.msra.mxu0 %v1163
        %1250 = vmatprep.subr.bf16.mxu0 %v1162
        %1251 = vmatpush2.bf16.msra.mxu0 %v1161
        %1252 = vmatprep.subr.bf16.mxu0 %v1160
        %1253 = vmatpush2.bf16.msra.mxu0 %v1159
        %1254 = vmatprep.mubr.bf16.mxu0 %v1026
        %1255 = vmatmul.mubr.bf16.gmra.mxu0 %v1025
        %v1256 = vpop.f32.mrf.mxu0
        %v1257 = vadd.f32 %v988, %v1256
        %v1258 = vpop.f32.mrf.mxu0
        %v1259 = vadd.f32 %v988, %v1258
        %v1260 = vpop.f32.mrf.mxu0
        %v1261 = vadd.f32 %v993, %v1260
        %v1262 = vpop.f32.mrf.mxu0
        %v1263 = vadd.f32 %v993, %v1262
        %1264 = vmatprep.mubr.bf16.mxu0 %v1029
        %1265 = vmatmul.mubr.bf16.gmra.mxu0 %v1028
        %v1266 = vpop.f32.mrf.mxu0
        %v1267 = vadd.f32 %v998, %v1266
        %v1268 = vpop.f32.mrf.mxu0
        %v1269 = vadd.f32 %v998, %v1268
        %v1270 = vpop.f32.mrf.mxu0
        %v1271 = vadd.f32 %v1003, %v1270
        %v1272 = vpop.f32.mrf.mxu0
        %v1273 = vadd.f32 %v1003, %v1272
        %1274 = vdwg.mxu0
        %1275 = vmatprep.subr.bf16.mxu0 0
        %1276 = vmatpush1.bf16.msra.mxu0 0
        %1277 = vmatprep.subr.bf16.mxu0 0
        %1278 = vmatpush1.bf16.msra.mxu0 0
        %1279 = vmatprep.subr.bf16.mxu0 0
        %1280 = vmatpush1.bf16.msra.mxu0 0
        %1281 = vmatprep.subr.bf16.mxu0 0
        %1282 = vmatpush1.bf16.msra.mxu0 0
        %1283 = vmatprep.subr.bf16.mxu0 0
        %1284 = vmatpush1.bf16.msra.mxu0 0
        %1285 = vmatprep.subr.bf16.mxu0 0
        %1286 = vmatpush1.bf16.msra.mxu0 0
        %1287 = vmatprep.subr.bf16.mxu0 %v1178
        %1288 = vmatpush1.bf16.msra.mxu0 %v1177
        %1289 = vmatprep.subr.bf16.mxu0 %v1176
        %1290 = vmatpush1.bf16.msra.mxu0 %v1175
        %1291 = vmatprep.subr.bf16.mxu0 0
        %1292 = vmatpush2.bf16.msra.mxu0 0
        %1293 = vmatprep.subr.bf16.mxu0 0
        %1294 = vmatpush2.bf16.msra.mxu0 0
        %1295 = vmatprep.subr.bf16.mxu0 0
        %1296 = vmatpush2.bf16.msra.mxu0 0
        %1297 = vmatprep.subr.bf16.mxu0 0
        %1298 = vmatpush2.bf16.msra.mxu0 0
        %1299 = vmatprep.subr.bf16.mxu0 0
        %1300 = vmatpush2.bf16.msra.mxu0 0
        %1301 = vmatprep.subr.bf16.mxu0 0
        %1302 = vmatpush2.bf16.msra.mxu0 0
        %1303 = vmatprep.subr.bf16.mxu0 0
        %1304 = vmatpush2.bf16.msra.mxu0 0
        %1305 = vmatprep.subr.bf16.mxu0 0
        %1306 = vmatpush2.bf16.msra.mxu0 0
        %1307 = vmatprep.mubr.bf16.mxu0 0
        %1308 = vmatmul.mubr.bf16.gmra.mxu0 %v1217
        %v1309 = vpop.f32.mrf.mxu0
        %v1310 = vadd.f32 %v1257, %v1309
        %v1311 = vpop.f32.mrf.mxu0
        %v1312 = vadd.f32 %v1259, %v1311
        %v1313 = vpop.f32.mrf.mxu0
        %v1314 = vadd.f32 %v1261, %v1313
        %v1315 = vpop.f32.mrf.mxu0
        %v1316 = vadd.f32 %v1263, %v1315
        %1317 = vmatprep.mubr.bf16.mxu0 0
        %1318 = vmatmul.mubr.bf16.gmra.mxu0 %v1220
        %v1319 = vpop.f32.mrf.mxu0
        %v1320 = vadd.f32 %v1267, %v1319
        %v1321 = vpop.f32.mrf.mxu0
        %v1322 = vadd.f32 %v1269, %v1321
        %v1323 = vpop.f32.mrf.mxu0
        %v1324 = vadd.f32 %v1271, %v1323
        %v1325 = vpop.f32.mrf.mxu0
        %v1326 = vadd.f32 %v1273, %v1325
        %1327 = vdwg.mxu0
        %v1328 = vmax.f32 %v1310, 0.0
        %v1329 = vmax.f32 %v1312, 0.0
        %v1330 = vmax.f32 %v1314, 0.0
        %v1331 = vmax.f32 %v1316, 0.0
        %v1332 = vmax.f32 %v1320, 0.0
        %v1333 = vmax.f32 %v1322, 0.0
        %v1334 = vmax.f32 %v1324, 0.0
        %v1335 = vmax.f32 %v1326, 0.0
        %1336 = vst [vmem:[#allocation3] sm:$0xf] 0
        %1337 = vst [vmem:[#allocation3 + $0x10] sm:$0xf] 0
        %1338 = vst [vmem:[#allocation3 + $0x20] sm:$0xf] 0
        %1339 = vst [vmem:[#allocation3 + $0x30] sm:$0xf] 0
        %1340 = vst [vmem:[#allocation3 + $0xc] sm:$0xf] 0
        %1341 = vst [vmem:[#allocation3 + $0x1c] sm:$0xf] 0
        %1342 = vst [vmem:[#allocation3 + $0x2c] sm:$0xf] 0
        %1343 = vst [vmem:[#allocation3 + $0x3c] sm:$0xf] 0
        %v1344 = vpack.c.bf16 %v1330, %v1328
        %v1345 = vpack.c.bf16 %v1331, %v1329
        %v1346 = vpack.c.bf16 %v1334, %v1332
        %v1347 = vpack.c.bf16 %v1335, %v1333
        %v1352 = vunpack.c.l.b16 %v1344
        %v1353 = vunpack.c.l.b16 %v1345
        %v1354 = vunpack.c.h.b16 %v1344
        %v1355 = vunpack.c.h.b16 %v1345
        %v1356 = vunpack.c.l.b16 %v1346
        %v1357 = vunpack.c.l.b16 %v1347
        %v1358 = vunpack.c.h.b16 %v1346
        %v1359 = vunpack.c.h.b16 %v1347
        %v1360 = vpack.c.b16 %v1353, %v1352
        %v1361 = vpack.c.b16 %v1355, %v1354
        %v1362 = vpack.c.b16 %v1357, %v1356
        %v1363 = vpack.c.b16 %v1359, %v1358
        %1368 = vst [vmem:[#allocation3 + $0x4] sm:$0xff] %v1360
        %1369 = vst [vmem:[#allocation3 + $0x14] sm:$0xff] %v1361
        %1370 = vst [vmem:[#allocation3 + $0x24] sm:$0xff] %v1362
        %1371 = vst [vmem:[#allocation3 + $0x34] sm:$0xff] %v1363
        %v1372 = vld [vmem:[#allocation3] sm:$0xff]
        %v1373 = vld [vmem:[#allocation3 + $0x8] sm:$0xf]
        %v1374 = vld [vmem:[#allocation3 + $0x10] sm:$0xff]
        %v1375 = vld [vmem:[#allocation3 + $0x18] sm:$0xf]
        %v1376 = vld [vmem:[#allocation3 + $0x20] sm:$0xff]
        %v1377 = vld [vmem:[#allocation3 + $0x28] sm:$0xf]
        %v1378 = vld [vmem:[#allocation3 + $0x30] sm:$0xff]
        %v1379 = vld [vmem:[#allocation3 + $0x38] sm:$0xf]
        %v1380 = vmul.bf16 %v1372, %v368
        %v1381 = vmul.bf16 %v1373, %v366
        %v1382 = vmul.bf16 %v1374, %v368
        %v1383 = vmul.bf16 %v1375, %v366
        %v1384 = vmul.bf16 %v1376, %v368
        %v1385 = vmul.bf16 %v1377, %v366
        %v1386 = vmul.bf16 %v1378, %v368
        %v1387 = vmul.bf16 %v1379, %v366
        %v1388 = vmul.bf16 %v1372, %v402
        %v1389 = vmul.bf16 %v1373, %v400
        %v1390 = vmul.bf16 %v1374, %v402
        %v1391 = vmul.bf16 %v1375, %v400
        %v1392 = vmul.bf16 %v1376, %v402
        %v1393 = vmul.bf16 %v1377, %v400
        %v1394 = vmul.bf16 %v1378, %v402
        %v1395 = vmul.bf16 %v1379, %v400
        %v1396 = vmul.bf16 %v1372, %v430
        %v1397 = vmul.bf16 %v1373, %v428
        %v1398 = vmul.bf16 %v1374, %v430
        %v1399 = vmul.bf16 %v1375, %v428
        %v1400 = vmul.bf16 %v1376, %v430
        %v1401 = vmul.bf16 %v1377, %v428
        %v1402 = vmul.bf16 %v1378, %v430
        %v1403 = vmul.bf16 %v1379, %v428
        %v1404 = vmul.bf16 %v1372, %v458
        %v1405 = vmul.bf16 %v1373, %v456
        %v1406 = vmul.bf16 %v1374, %v458
        %v1407 = vmul.bf16 %v1375, %v456
        %v1408 = vmul.bf16 %v1376, %v458
        %v1409 = vmul.bf16 %v1377, %v456
        %v1410 = vmul.bf16 %v1378, %v458
        %v1411 = vmul.bf16 %v1379, %v456
        %v1412 = vld [vmem:[#allocation3 + $0x4] sm:$0xff]
        %v1413 = vld [vmem:[#allocation3 + $0x14] sm:$0xff]
        %v1414 = vld [vmem:[#allocation3 + $0x24] sm:$0xff]
        %v1415 = vld [vmem:[#allocation3 + $0x34] sm:$0xff]
        %v1416 = vmul.bf16 %v1412, %v485
        %v1417 = vmul.bf16 %v1413, %v485
        %v1418 = vmul.bf16 %v1414, %v485
        %v1419 = vmul.bf16 %v1415, %v485
        %v1420 = vld [vmem:[#allocation3 + $0x4] sm:$0xff]
        %v1421 = vld [vmem:[#allocation3 + $0xc] sm:$0xf]
        %v1422 = vld [vmem:[#allocation3 + $0x14] sm:$0xff]
        %v1423 = vld [vmem:[#allocation3 + $0x1c] sm:$0xf]
        %v1424 = vld [vmem:[#allocation3 + $0x24] sm:$0xff]
        %v1425 = vld [vmem:[#allocation3 + $0x2c] sm:$0xf]
        %v1426 = vld [vmem:[#allocation3 + $0x34] sm:$0xff]
        %v1427 = vld [vmem:[#allocation3 + $0x3c] sm:$0xf]
        %v1428 = vmul.bf16 %v1420, %v516
        %v1429 = vmul.bf16 %v1421, %v514
        %v1430 = vmul.bf16 %v1422, %v516
        %v1431 = vmul.bf16 %v1423, %v514
        %v1432 = vmul.bf16 %v1424, %v516
        %v1433 = vmul.bf16 %v1425, %v514
        %v1434 = vmul.bf16 %v1426, %v516
        %v1435 = vmul.bf16 %v1427, %v514
        %v1436 = vmul.bf16 %v1420, %v544
        %v1437 = vmul.bf16 %v1421, %v542
        %v1438 = vmul.bf16 %v1422, %v544
        %v1439 = vmul.bf16 %v1423, %v542
        %v1440 = vmul.bf16 %v1424, %v544
        %v1441 = vmul.bf16 %v1425, %v542
        %v1442 = vmul.bf16 %v1426, %v544
        %v1443 = vmul.bf16 %v1427, %v542
        %v1444 = vmul.bf16 %v1420, %v572
        %v1445 = vmul.bf16 %v1421, %v570
        %v1446 = vmul.bf16 %v1422, %v572
        %v1447 = vmul.bf16 %v1423, %v570
        %v1448 = vmul.bf16 %v1424, %v572
        %v1449 = vmul.bf16 %v1425, %v570
        %v1450 = vmul.bf16 %v1426, %v572
        %v1451 = vmul.bf16 %v1427, %v570
        %v1452 = vmul.bf16 %v1420, %v611
        %v1453 = vmul.bf16 %v1421, %v609
        %v1454 = vmul.bf16 %v1422, %v611
        %v1455 = vmul.bf16 %v1423, %v609
        %v1456 = vmul.bf16 %v1424, %v611
        %v1457 = vmul.bf16 %v1425, %v609
        %v1458 = vmul.bf16 %v1426, %v611
        %v1459 = vmul.bf16 %v1427, %v609
        %v1468 = vunpack.c.l.b16 %v1380
        %v1469 = vunpack.c.h.b16 %v1380
        %v1470 = vunpack.c.l.b16 %v1381
        %v1471 = vunpack.c.l.b16 %v1382
        %v1472 = vunpack.c.h.b16 %v1382
        %v1473 = vunpack.c.l.b16 %v1383
        %v1474 = vunpack.c.l.b16 %v1384
        %v1475 = vunpack.c.h.b16 %v1384
        %v1476 = vunpack.c.l.b16 %v1385
        %v1477 = vunpack.c.l.b16 %v1386
        %v1478 = vunpack.c.h.b16 %v1386
        %v1479 = vunpack.c.l.b16 %v1387
        %v1480 = vpack.c.b16 %v1471, %v1468
        %v1481 = vpack.c.b16 %v1472, %v1469
        %v1482 = vpack.c.b16 %v1473, %v1470
        %v1483 = vpack.c.b16 %v1477, %v1474
        %v1484 = vpack.c.b16 %v1478, %v1475
        %v1485 = vpack.c.b16 %v1479, %v1476
        %v1494 = vunpack.c.l.b16 %v1388
        %v1495 = vunpack.c.h.b16 %v1388
        %v1496 = vunpack.c.l.b16 %v1389
        %v1497 = vunpack.c.l.b16 %v1390
        %v1498 = vunpack.c.h.b16 %v1390
        %v1499 = vunpack.c.l.b16 %v1391
        %v1500 = vunpack.c.l.b16 %v1392
        %v1501 = vunpack.c.h.b16 %v1392
        %v1502 = vunpack.c.l.b16 %v1393
        %v1503 = vunpack.c.l.b16 %v1394
        %v1504 = vunpack.c.h.b16 %v1394
        %v1505 = vunpack.c.l.b16 %v1395
        %v1506 = vpack.c.b16 %v1497, %v1494
        %v1507 = vpack.c.b16 %v1498, %v1495
        %v1508 = vpack.c.b16 %v1499, %v1496
        %v1509 = vpack.c.b16 %v1503, %v1500
        %v1510 = vpack.c.b16 %v1504, %v1501
        %v1511 = vpack.c.b16 %v1505, %v1502
        %1512 = vrot.lane.b32.xlu0 %v1506, 127
        %v1513 = vpop.permute.xlu0 %1512
        %1514 = vrot.lane.b32.xlu0 %v1507, 127
        %v1515 = vpop.permute.xlu0 %1514
        %1516 = vrot.lane.b32.xlu0 %v1508, 127
        %v1517 = vpop.permute.xlu0 %1516
        %1518 = vrot.lane.b32.xlu0 %v1509, 127
        %v1519 = vpop.permute.xlu0 %1518
        %1520 = vrot.lane.b32.xlu0 %v1510, 127
        %v1521 = vpop.permute.xlu0 %1520
        %1522 = vrot.lane.b32.xlu0 %v1511, 127
        %v1523 = vpop.permute.xlu0 %1522
        %v1524 = vsel %vm457, %v1513, %v1515
        %v1525 = vsel %vm457, %v1515, %v1517
        %v1526 = vsel %vm457, %v1519, %v1521
        %v1527 = vsel %vm457, %v1521, %v1523
        %v1536 = vunpack.c.l.b16 %v1396
        %v1537 = vunpack.c.h.b16 %v1396
        %v1538 = vunpack.c.l.b16 %v1397
        %v1539 = vunpack.c.l.b16 %v1398
        %v1540 = vunpack.c.h.b16 %v1398
        %v1541 = vunpack.c.l.b16 %v1399
        %v1542 = vunpack.c.l.b16 %v1400
        %v1543 = vunpack.c.h.b16 %v1400
        %v1544 = vunpack.c.l.b16 %v1401
        %v1545 = vunpack.c.l.b16 %v1402
        %v1546 = vunpack.c.h.b16 %v1402
        %v1547 = vunpack.c.l.b16 %v1403
        %v1548 = vpack.c.b16 %v1539, %v1536
        %v1549 = vpack.c.b16 %v1540, %v1537
        %v1550 = vpack.c.b16 %v1541, %v1538
        %v1551 = vpack.c.b16 %v1545, %v1542
        %v1552 = vpack.c.b16 %v1546, %v1543
        %v1553 = vpack.c.b16 %v1547, %v1544
        %1554 = vrot.lane.b32.xlu0 %v1548, 126
        %v1555 = vpop.permute.xlu0 %1554
        %1556 = vrot.lane.b32.xlu0 %v1549, 126
        %v1557 = vpop.permute.xlu0 %1556
        %1558 = vrot.lane.b32.xlu0 %v1550, 126
        %v1559 = vpop.permute.xlu0 %1558
        %1560 = vrot.lane.b32.xlu0 %v1551, 126
        %v1561 = vpop.permute.xlu0 %1560
        %1562 = vrot.lane.b32.xlu0 %v1552, 126
        %v1563 = vpop.permute.xlu0 %1562
        %1564 = vrot.lane.b32.xlu0 %v1553, 126
        %v1565 = vpop.permute.xlu0 %1564
        %v1566 = vsel %vm728, %v1555, %v1557
        %v1567 = vsel %vm728, %v1557, %v1559
        %v1568 = vsel %vm728, %v1561, %v1563
        %v1569 = vsel %vm728, %v1563, %v1565
        %v1578 = vunpack.c.l.b16 %v1404
        %v1579 = vunpack.c.h.b16 %v1404
        %v1580 = vunpack.c.l.b16 %v1405
        %v1581 = vunpack.c.l.b16 %v1406
        %v1582 = vunpack.c.h.b16 %v1406
        %v1583 = vunpack.c.l.b16 %v1407
        %v1584 = vunpack.c.l.b16 %v1408
        %v1585 = vunpack.c.h.b16 %v1408
        %v1586 = vunpack.c.l.b16 %v1409
        %v1587 = vunpack.c.l.b16 %v1410
        %v1588 = vunpack.c.h.b16 %v1410
        %v1589 = vunpack.c.l.b16 %v1411
        %v1590 = vpack.c.b16 %v1581, %v1578
        %v1591 = vpack.c.b16 %v1582, %v1579
        %v1592 = vpack.c.b16 %v1583, %v1580
        %v1593 = vpack.c.b16 %v1587, %v1584
        %v1594 = vpack.c.b16 %v1588, %v1585
        %v1595 = vpack.c.b16 %v1589, %v1586
        %1596 = vrot.lane.b32.xlu0 %v1590, 112
        %v1597 = vpop.permute.xlu0 %1596
        %1598 = vrot.lane.b32.xlu0 %v1591, 112
        %v1599 = vpop.permute.xlu0 %1598
        %1600 = vrot.lane.b32.xlu0 %v1592, 112
        %v1601 = vpop.permute.xlu0 %1600
        %1602 = vrot.lane.b32.xlu0 %v1593, 112
        %v1603 = vpop.permute.xlu0 %1602
        %1604 = vrot.lane.b32.xlu0 %v1594, 112
        %v1605 = vpop.permute.xlu0 %1604
        %1606 = vrot.lane.b32.xlu0 %v1595, 112
        %v1607 = vpop.permute.xlu0 %1606
        %v1608 = vsel %vm401, %v1597, %v1599
        %v1609 = vsel %vm401, %v1599, %v1601
        %v1610 = vsel %vm401, %v1603, %v1605
        %v1611 = vsel %vm401, %v1605, %v1607
        %v1616 = vunpack.c.l.b16 %v1416
        %v1617 = vunpack.c.h.b16 %v1416
        %v1618 = vunpack.c.l.b16 %v1417
        %v1619 = vunpack.c.h.b16 %v1417
        %v1620 = vunpack.c.l.b16 %v1418
        %v1621 = vunpack.c.h.b16 %v1418
        %v1622 = vunpack.c.l.b16 %v1419
        %v1623 = vunpack.c.h.b16 %v1419
        %v1624 = vpack.c.b16 %v1618, %v1616
        %v1625 = vpack.c.b16 %v1619, %v1617
        %v1626 = vpack.c.b16 %v1622, %v1620
        %v1627 = vpack.c.b16 %v1623, %v1621
        %1628 = vrot.lane.b32.xlu0 %v1624, 111
        %v1629 = vpop.permute.xlu0 %1628
        %1630 = vrot.lane.b32.xlu0 %v1625, 111
        %v1631 = vpop.permute.xlu0 %1630
        %1632 = vrot.lane.b32.xlu0 %v1626, 111
        %v1633 = vpop.permute.xlu0 %1632
        %1634 = vrot.lane.b32.xlu0 %v1627, 111
        %v1635 = vpop.permute.xlu0 %1634
        %v1636 = vsel %vm367, %v1629, %v1631
        %v1637 = vsel %vm367, %v1633, %v1635
        %v1646 = vunpack.c.l.b16 %v1428
        %v1647 = vunpack.c.h.b16 %v1428
        %v1648 = vunpack.c.l.b16 %v1429
        %v1649 = vunpack.c.l.b16 %v1430
        %v1650 = vunpack.c.h.b16 %v1430
        %v1651 = vunpack.c.l.b16 %v1431
        %v1652 = vunpack.c.l.b16 %v1432
        %v1653 = vunpack.c.h.b16 %v1432
        %v1654 = vunpack.c.l.b16 %v1433
        %v1655 = vunpack.c.l.b16 %v1434
        %v1656 = vunpack.c.h.b16 %v1434
        %v1657 = vunpack.c.l.b16 %v1435
        %v1658 = vpack.c.b16 %v1649, %v1646
        %v1659 = vpack.c.b16 %v1650, %v1647
        %v1660 = vpack.c.b16 %v1651, %v1648
        %v1661 = vpack.c.b16 %v1655, %v1652
        %v1662 = vpack.c.b16 %v1656, %v1653
        %v1663 = vpack.c.b16 %v1657, %v1654
        %1664 = vrot.lane.b32.xlu0 %v1658, 110
        %v1665 = vpop.permute.xlu0 %1664
        %1666 = vrot.lane.b32.xlu0 %v1659, 110
        %v1667 = vpop.permute.xlu0 %1666
        %1668 = vrot.lane.b32.xlu0 %v1660, 110
        %v1669 = vpop.permute.xlu0 %1668
        %1670 = vrot.lane.b32.xlu0 %v1661, 110
        %v1671 = vpop.permute.xlu0 %1670
        %1672 = vrot.lane.b32.xlu0 %v1662, 110
        %v1673 = vpop.permute.xlu0 %1672
        %1674 = vrot.lane.b32.xlu0 %v1663, 110
        %v1675 = vpop.permute.xlu0 %1674
        %v1676 = vsel %vm839, %v1665, %v1667
        %v1677 = vsel %vm839, %v1667, %v1669
        %v1678 = vsel %vm839, %v1671, %v1673
        %v1679 = vsel %vm839, %v1673, %v1675
        %v1688 = vunpack.c.l.b16 %v1436
        %v1689 = vunpack.c.h.b16 %v1436
        %v1690 = vunpack.c.l.b16 %v1437
        %v1691 = vunpack.c.l.b16 %v1438
        %v1692 = vunpack.c.h.b16 %v1438
        %v1693 = vunpack.c.l.b16 %v1439
        %v1694 = vunpack.c.l.b16 %v1440
        %v1695 = vunpack.c.h.b16 %v1440
        %v1696 = vunpack.c.l.b16 %v1441
        %v1697 = vunpack.c.l.b16 %v1442
        %v1698 = vunpack.c.h.b16 %v1442
        %v1699 = vunpack.c.l.b16 %v1443
        %v1700 = vpack.c.b16 %v1691, %v1688
        %v1701 = vpack.c.b16 %v1692, %v1689
        %v1702 = vpack.c.b16 %v1693, %v1690
        %v1703 = vpack.c.b16 %v1697, %v1694
        %v1704 = vpack.c.b16 %v1698, %v1695
        %v1705 = vpack.c.b16 %v1699, %v1696
        %1706 = vrot.lane.b32.xlu0 %v1700, 96
        %v1707 = vpop.permute.xlu0 %1706
        %1708 = vrot.lane.b32.xlu0 %v1701, 96
        %v1709 = vpop.permute.xlu0 %1708
        %1710 = vrot.lane.b32.xlu0 %v1702, 96
        %v1711 = vpop.permute.xlu0 %1710
        %1712 = vrot.lane.b32.xlu0 %v1703, 96
        %v1713 = vpop.permute.xlu0 %1712
        %1714 = vrot.lane.b32.xlu0 %v1704, 96
        %v1715 = vpop.permute.xlu0 %1714
        %1716 = vrot.lane.b32.xlu0 %v1705, 96
        %v1717 = vpop.permute.xlu0 %1716
        %v1718 = vsel %vm882, %v1707, %v1709
        %v1719 = vsel %vm882, %v1709, %v1711
        %v1720 = vsel %vm882, %v1713, %v1715
        %v1721 = vsel %vm882, %v1715, %v1717
        %v1730 = vunpack.c.l.b16 %v1444
        %v1731 = vunpack.c.h.b16 %v1444
        %v1732 = vunpack.c.l.b16 %v1445
        %v1733 = vunpack.c.l.b16 %v1446
        %v1734 = vunpack.c.h.b16 %v1446
        %v1735 = vunpack.c.l.b16 %v1447
        %v1736 = vunpack.c.l.b16 %v1448
        %v1737 = vunpack.c.h.b16 %v1448
        %v1738 = vunpack.c.l.b16 %v1449
        %v1739 = vunpack.c.l.b16 %v1450
        %v1740 = vunpack.c.h.b16 %v1450
        %v1741 = vunpack.c.l.b16 %v1451
        %v1742 = vpack.c.b16 %v1733, %v1730
        %v1743 = vpack.c.b16 %v1734, %v1731
        %v1744 = vpack.c.b16 %v1735, %v1732
        %v1745 = vpack.c.b16 %v1739, %v1736
        %v1746 = vpack.c.b16 %v1740, %v1737
        %v1747 = vpack.c.b16 %v1741, %v1738
        %1748 = vrot.lane.b32.xlu0 %v1742, 95
        %v1749 = vpop.permute.xlu0 %1748
        %1750 = vrot.lane.b32.xlu0 %v1743, 95
        %v1751 = vpop.permute.xlu0 %1750
        %1752 = vrot.lane.b32.xlu0 %v1744, 95
        %v1753 = vpop.permute.xlu0 %1752
        %1754 = vrot.lane.b32.xlu0 %v1745, 95
        %v1755 = vpop.permute.xlu0 %1754
        %1756 = vrot.lane.b32.xlu0 %v1746, 95
        %v1757 = vpop.permute.xlu0 %1756
        %1758 = vrot.lane.b32.xlu0 %v1747, 95
        %v1759 = vpop.permute.xlu0 %1758
        %v1760 = vsel %vm925, %v1749, %v1751
        %v1761 = vsel %vm925, %v1751, %v1753
        %v1762 = vsel %vm925, %v1755, %v1757
        %v1763 = vsel %vm925, %v1757, %v1759
        %v1772 = vunpack.c.l.b16 %v1452
        %v1773 = vunpack.c.h.b16 %v1452
        %v1774 = vunpack.c.l.b16 %v1453
        %v1775 = vunpack.c.l.b16 %v1454
        %v1776 = vunpack.c.h.b16 %v1454
        %v1777 = vunpack.c.l.b16 %v1455
        %v1778 = vunpack.c.l.b16 %v1456
        %v1779 = vunpack.c.h.b16 %v1456
        %v1780 = vunpack.c.l.b16 %v1457
        %v1781 = vunpack.c.l.b16 %v1458
        %v1782 = vunpack.c.h.b16 %v1458
        %v1783 = vunpack.c.l.b16 %v1459
        %v1784 = vpack.c.b16 %v1775, %v1772
        %v1785 = vpack.c.b16 %v1776, %v1773
        %v1786 = vpack.c.b16 %v1777, %v1774
        %v1787 = vpack.c.b16 %v1781, %v1778
        %v1788 = vpack.c.b16 %v1782, %v1779
        %v1789 = vpack.c.b16 %v1783, %v1780
        %1790 = vrot.lane.b32.xlu0 %v1784, 94
        %v1791 = vpop.permute.xlu0 %1790
        %1792 = vrot.lane.b32.xlu0 %v1785, 94
        %v1793 = vpop.permute.xlu0 %1792
        %1794 = vrot.lane.b32.xlu0 %v1786, 94
        %v1795 = vpop.permute.xlu0 %1794
        %1796 = vrot.lane.b32.xlu0 %v1787, 94
        %v1797 = vpop.permute.xlu0 %1796
        %1798 = vrot.lane.b32.xlu0 %v1788, 94
        %v1799 = vpop.permute.xlu0 %1798
        %1800 = vrot.lane.b32.xlu0 %v1789, 94
        %v1801 = vpop.permute.xlu0 %1800
        %v1802 = vsel %vm968, %v1791, %v1793
        %v1803 = vsel %vm968, %v1793, %v1795
        %v1804 = vsel %vm968, %v1797, %v1799
        %v1805 = vsel %vm968, %v1799, %v1801
        %v1806 = vld [vmem:[#allocation7] sm:$0xff]
        %v1807 = vld [vmem:[#allocation7 + $0x8] sm:$0xf]
        %v1808 = vld [vmem:[#allocation7 + $0xc] sm:$0xff]
        %v1809 = vld [vmem:[#allocation7 + $0x14] sm:$0xf]
        %v1810 = vld [vmem:[#allocation7 + $0x18] sm:$0xff]
        %v1811 = vld [vmem:[#allocation7 + $0x20] sm:$0xf]
        %v1812 = vld [vmem:[#allocation7 + $0x24] sm:$0xff]
        %v1813 = vld [vmem:[#allocation7 + $0x2c] sm:$0xf]
        %v1814 = vld [vmem:[%s5] sm:$0xff]
        %v1815 = vld [vmem:[%s5 + $0x8] sm:$0xff]
        %v1816 = vld [vmem:[%s5 + $0x10] sm:$0xff]
        %v1817 = vld [vmem:[%s5 + $0x18] sm:$0xff]
        %1819 = vset.pattern.permute.xlu0 0
        %1820 = vperm.xlu0 %1819, %v1814
        %v1821 = vpop.permute.xlu0 %1820
        %1824 = vset.pattern.permute.xlu0 0
        %1825 = vperm.xlu0 %1824, %v1815
        %v1826 = vpop.permute.xlu0 %1825
        %1829 = vset.pattern.permute.xlu0 0
        %1830 = vperm.xlu0 %1829, %v1816
        %v1831 = vpop.permute.xlu0 %1830
        %1834 = vset.pattern.permute.xlu0 0
        %1835 = vperm.xlu0 %1834, %v1817
        %v1836 = vpop.permute.xlu0 %1835
        %v1846 = vunpack.c.l.b16 %v1806
        %v1847 = vunpack.c.h.b16 %v1806
        %v1848 = vunpack.c.l.b16 %v1807
        %v1849 = vunpack.c.l.b16 %v1808
        %v1850 = vunpack.c.h.b16 %v1808
        %v1851 = vunpack.c.l.b16 %v1809
        %v1852 = vunpack.c.l.b16 %v1810
        %v1853 = vunpack.c.h.b16 %v1810
        %v1854 = vunpack.c.l.b16 %v1811
        %v1855 = vunpack.c.l.b16 %v1812
        %v1856 = vunpack.c.h.b16 %v1812
        %v1857 = vunpack.c.l.b16 %v1813
        %v1858 = vpack.c.b16 %v1849, %v1846
        %v1859 = vpack.c.b16 %v1850, %v1847
        %v1860 = vpack.c.b16 %v1851, %v1848
        %v1861 = vpack.c.b16 %v1855, %v1852
        %v1862 = vpack.c.b16 %v1856, %v1853
        %v1863 = vpack.c.b16 %v1857, %v1854
        %1868 = vrot.lane.b32.xlu0 %v1480, 17
        %v1869 = vpop.permute.xlu0 %1868
        %1870 = vrot.lane.b32.xlu0 %v1481, 17
        %v1871 = vpop.permute.xlu0 %1870
        %1872 = vrot.lane.b32.xlu0 %v1482, 17
        %v1873 = vpop.permute.xlu0 %1872
        %1874 = vrot.lane.b32.xlu0 %v1483, 17
        %v1875 = vpop.permute.xlu0 %1874
        %1876 = vrot.lane.b32.xlu0 %v1484, 17
        %v1877 = vpop.permute.xlu0 %1876
        %1878 = vrot.lane.b32.xlu0 %v1485, 17
        %v1879 = vpop.permute.xlu0 %1878
        %1880 = vrot.lane.b32.xlu0 %v1524, 17
        %v1881 = vpop.permute.xlu0 %1880
        %1882 = vrot.lane.b32.xlu0 %v1525, 17
        %v1883 = vpop.permute.xlu0 %1882
        %1884 = vrot.lane.b32.xlu0 %v1517, 17
        %v1885 = vpop.permute.xlu0 %1884
        %1886 = vrot.lane.b32.xlu0 %v1526, 17
        %v1887 = vpop.permute.xlu0 %1886
        %1888 = vrot.lane.b32.xlu0 %v1527, 17
        %v1889 = vpop.permute.xlu0 %1888
        %1890 = vrot.lane.b32.xlu0 %v1523, 17
        %v1891 = vpop.permute.xlu0 %1890
        %1892 = vrot.lane.b32.xlu0 %v1566, 17
        %v1893 = vpop.permute.xlu0 %1892
        %1894 = vrot.lane.b32.xlu0 %v1567, 17
        %v1895 = vpop.permute.xlu0 %1894
        %1896 = vrot.lane.b32.xlu0 %v1559, 17
        %v1897 = vpop.permute.xlu0 %1896
        %1898 = vrot.lane.b32.xlu0 %v1568, 17
        %v1899 = vpop.permute.xlu0 %1898
        %1900 = vrot.lane.b32.xlu0 %v1569, 17
        %v1901 = vpop.permute.xlu0 %1900
        %1902 = vrot.lane.b32.xlu0 %v1565, 17
        %v1903 = vpop.permute.xlu0 %1902
        %1904 = vrot.lane.b32.xlu0 %v1608, 17
        %v1905 = vpop.permute.xlu0 %1904
        %1906 = vrot.lane.b32.xlu0 %v1609, 17
        %v1907 = vpop.permute.xlu0 %1906
        %1908 = vrot.lane.b32.xlu0 %v1601, 17
        %v1909 = vpop.permute.xlu0 %1908
        %1910 = vrot.lane.b32.xlu0 %v1610, 17
        %v1911 = vpop.permute.xlu0 %1910
        %1912 = vrot.lane.b32.xlu0 %v1611, 17
        %v1913 = vpop.permute.xlu0 %1912
        %1914 = vrot.lane.b32.xlu0 %v1607, 17
        %v1915 = vpop.permute.xlu0 %1914
        %1916 = vrot.lane.b32.xlu0 %v1629, 17
        %v1917 = vpop.permute.xlu0 %1916
        %1918 = vrot.lane.b32.xlu0 %v1636, 17
        %v1919 = vpop.permute.xlu0 %1918
        %1920 = vrot.lane.b32.xlu0 %v1631, 17
        %v1921 = vpop.permute.xlu0 %1920
        %1922 = vrot.lane.b32.xlu0 %v1633, 17
        %v1923 = vpop.permute.xlu0 %1922
        %1924 = vrot.lane.b32.xlu0 %v1637, 17
        %v1925 = vpop.permute.xlu0 %1924
        %1926 = vrot.lane.b32.xlu0 %v1635, 17
        %v1927 = vpop.permute.xlu0 %1926
        %1928 = vrot.lane.b32.xlu0 %v1665, 17
        %v1929 = vpop.permute.xlu0 %1928
        %1930 = vrot.lane.b32.xlu0 %v1676, 17
        %v1931 = vpop.permute.xlu0 %1930
        %1932 = vrot.lane.b32.xlu0 %v1677, 17
        %v1933 = vpop.permute.xlu0 %1932
        %1934 = vrot.lane.b32.xlu0 %v1671, 17
        %v1935 = vpop.permute.xlu0 %1934
        %1936 = vrot.lane.b32.xlu0 %v1678, 17
        %v1937 = vpop.permute.xlu0 %1936
        %1938 = vrot.lane.b32.xlu0 %v1679, 17
        %v1939 = vpop.permute.xlu0 %1938
        %1940 = vrot.lane.b32.xlu0 %v1707, 17
        %v1941 = vpop.permute.xlu0 %1940
        %1942 = vrot.lane.b32.xlu0 %v1718, 17
        %v1943 = vpop.permute.xlu0 %1942
        %1944 = vrot.lane.b32.xlu0 %v1719, 17
        %v1945 = vpop.permute.xlu0 %1944
        %1946 = vrot.lane.b32.xlu0 %v1713, 17
        %v1947 = vpop.permute.xlu0 %1946
        %1948 = vrot.lane.b32.xlu0 %v1720, 17
        %v1949 = vpop.permute.xlu0 %1948
        %1950 = vrot.lane.b32.xlu0 %v1721, 17
        %v1951 = vpop.permute.xlu0 %1950
        %1952 = vrot.lane.b32.xlu0 %v1749, 17
        %v1953 = vpop.permute.xlu0 %1952
        %1954 = vrot.lane.b32.xlu0 %v1760, 17
        %v1955 = vpop.permute.xlu0 %1954
        %1956 = vrot.lane.b32.xlu0 %v1761, 17
        %v1957 = vpop.permute.xlu0 %1956
        %1958 = vrot.lane.b32.xlu0 %v1755, 17
        %v1959 = vpop.permute.xlu0 %1958
        %1960 = vrot.lane.b32.xlu0 %v1762, 17
        %v1961 = vpop.permute.xlu0 %1960
        %1962 = vrot.lane.b32.xlu0 %v1763, 17
        %v1963 = vpop.permute.xlu0 %1962
        %1964 = vrot.lane.b32.xlu0 %v1791, 17
        %v1965 = vpop.permute.xlu0 %1964
        %1966 = vrot.lane.b32.xlu0 %v1802, 17
        %v1967 = vpop.permute.xlu0 %1966
        %1968 = vrot.lane.b32.xlu0 %v1803, 17
        %v1969 = vpop.permute.xlu0 %1968
        %1970 = vrot.lane.b32.xlu0 %v1797, 17
        %v1971 = vpop.permute.xlu0 %1970
        %1972 = vrot.lane.b32.xlu0 %v1804, 17
        %v1973 = vpop.permute.xlu0 %1972
        %1974 = vrot.lane.b32.xlu0 %v1805, 17
        %v1975 = vpop.permute.xlu0 %1974
        %v1976 = vsel %vm610, %v1869, %v1871
        %v1977 = vsel %vm610, %v1871, %v1873
        %v1978 = vsel %vm610, %v1875, %v1877
        %v1979 = vsel %vm610, %v1877, %v1879
        %v1980 = vsel %vm610, %v1881, %v1883
        %v1981 = vsel %vm610, %v1883, %v1885
        %v1982 = vsel %vm610, %v1887, %v1889
        %v1983 = vsel %vm610, %v1889, %v1891
        %v1984 = vsel %vm610, %v1893, %v1895
        %v1985 = vsel %vm610, %v1895, %v1897
        %v1986 = vsel %vm610, %v1899, %v1901
        %v1987 = vsel %vm610, %v1901, %v1903
        %v1988 = vsel %vm610, %v1905, %v1907
        %v1989 = vsel %vm610, %v1907, %v1909
        %v1990 = vsel %vm610, %v1911, %v1913
        %v1991 = vsel %vm610, %v1913, %v1915
        %v1992 = vsel %vm610, %v1917, %v1919
        %v1993 = vsel %vm610, %v1919, %v1921
        %v1994 = vsel %vm610, %v1923, %v1925
        %v1995 = vsel %vm610, %v1925, %v1927
        %v1996 = vsel %vm610, %v1929, %v1931
        %v1997 = vsel %vm610, %v1931, %v1933
        %v1998 = vsel %vm610, %v1935, %v1937
        %v1999 = vsel %vm610, %v1937, %v1939
        %v2000 = vsel %vm610, %v1941, %v1943
        %v2001 = vsel %vm610, %v1943, %v1945
        %v2002 = vsel %vm610, %v1947, %v1949
        %v2003 = vsel %vm610, %v1949, %v1951
        %v2004 = vsel %vm610, %v1953, %v1955
        %v2005 = vsel %vm610, %v1955, %v1957
        %v2006 = vsel %vm610, %v1959, %v1961
        %v2007 = vsel %vm610, %v1961, %v1963
        %v2008 = vsel %vm610, %v1965, %v1967
        %v2009 = vsel %vm610, %v1967, %v1969
        %v2010 = vsel %vm610, %v1971, %v1973
        %v2011 = vsel %vm610, %v1973, %v1975
        %v2049 = vsel %vm1215, %v1860, 0
        %v2052 = vsel %vm1215, %v1863, 0
        %2054 = vmatprep.subr.bf16.mxu0 %v1991
        %2055 = vmatpush1.bf16.msra.mxu0 %v1990
        %2056 = vmatprep.subr.bf16.mxu0 %v1989
        %2057 = vmatpush1.bf16.msra.mxu0 %v1988
        %2058 = vmatprep.subr.bf16.mxu0 %v1987
        %2059 = vmatpush1.bf16.msra.mxu0 %v1986
        %2060 = vmatprep.subr.bf16.mxu0 %v1985
        %2061 = vmatpush1.bf16.msra.mxu0 %v1984
        %2062 = vmatprep.subr.bf16.mxu0 %v1983
        %2063 = vmatpush1.bf16.msra.mxu0 %v1982
        %2064 = vmatprep.subr.bf16.mxu0 %v1981
        %2065 = vmatpush1.bf16.msra.mxu0 %v1980
        %2066 = vmatprep.subr.bf16.mxu0 %v1979
        %2067 = vmatpush1.bf16.msra.mxu0 %v1978
        %2068 = vmatprep.subr.bf16.mxu0 %v1977
        %2069 = vmatpush1.bf16.msra.mxu0 %v1976
        %2070 = vmatprep.subr.bf16.mxu0 %v2007
        %2071 = vmatpush2.bf16.msra.mxu0 %v2006
        %2072 = vmatprep.subr.bf16.mxu0 %v2005
        %2073 = vmatpush2.bf16.msra.mxu0 %v2004
        %2074 = vmatprep.subr.bf16.mxu0 %v2003
        %2075 = vmatpush2.bf16.msra.mxu0 %v2002
        %2076 = vmatprep.subr.bf16.mxu0 %v2001
        %2077 = vmatpush2.bf16.msra.mxu0 %v2000
        %2078 = vmatprep.subr.bf16.mxu0 %v1999
        %2079 = vmatpush2.bf16.msra.mxu0 %v1998
        %2080 = vmatprep.subr.bf16.mxu0 %v1997
        %2081 = vmatpush2.bf16.msra.mxu0 %v1996
        %2082 = vmatprep.subr.bf16.mxu0 %v1995
        %2083 = vmatpush2.bf16.msra.mxu0 %v1994
        %2084 = vmatprep.subr.bf16.mxu0 %v1993
        %2085 = vmatpush2.bf16.msra.mxu0 %v1992
        %2086 = vmatprep.mubr.bf16.mxu0 %v1859
        %2087 = vmatmul.mubr.bf16.gmra.mxu0 %v1858
        %v2088 = vpop.f32.mrf.mxu0
        %v2089 = vadd.f32 %v1821, %v2088
        %v2090 = vpop.f32.mrf.mxu0
        %v2091 = vadd.f32 %v1821, %v2090
        %v2092 = vpop.f32.mrf.mxu0
        %v2093 = vadd.f32 %v1826, %v2092
        %v2094 = vpop.f32.mrf.mxu0
        %v2095 = vadd.f32 %v1826, %v2094
        %2096 = vmatprep.mubr.bf16.mxu0 %v1862
        %2097 = vmatmul.mubr.bf16.gmra.mxu0 %v1861
        %v2098 = vpop.f32.mrf.mxu0
        %v2099 = vadd.f32 %v1831, %v2098
        %v2100 = vpop.f32.mrf.mxu0
        %v2101 = vadd.f32 %v1831, %v2100
        %v2102 = vpop.f32.mrf.mxu0
        %v2103 = vadd.f32 %v1836, %v2102
        %v2104 = vpop.f32.mrf.mxu0
        %v2105 = vadd.f32 %v1836, %v2104
        %2106 = vdwg.mxu0
        %2107 = vmatprep.subr.bf16.mxu0 0
        %2108 = vmatpush1.bf16.msra.mxu0 0
        %2109 = vmatprep.subr.bf16.mxu0 0
        %2110 = vmatpush1.bf16.msra.mxu0 0
        %2111 = vmatprep.subr.bf16.mxu0 0
        %2112 = vmatpush1.bf16.msra.mxu0 0
        %2113 = vmatprep.subr.bf16.mxu0 0
        %2114 = vmatpush1.bf16.msra.mxu0 0
        %2115 = vmatprep.subr.bf16.mxu0 0
        %2116 = vmatpush1.bf16.msra.mxu0 0
        %2117 = vmatprep.subr.bf16.mxu0 0
        %2118 = vmatpush1.bf16.msra.mxu0 0
        %2119 = vmatprep.subr.bf16.mxu0 %v2011
        %2120 = vmatpush1.bf16.msra.mxu0 %v2010
        %2121 = vmatprep.subr.bf16.mxu0 %v2009
        %2122 = vmatpush1.bf16.msra.mxu0 %v2008
        %2123 = vmatprep.subr.bf16.mxu0 0
        %2124 = vmatpush2.bf16.msra.mxu0 0
        %2125 = vmatprep.subr.bf16.mxu0 0
        %2126 = vmatpush2.bf16.msra.mxu0 0
        %2127 = vmatprep.subr.bf16.mxu0 0
        %2128 = vmatpush2.bf16.msra.mxu0 0
        %2129 = vmatprep.subr.bf16.mxu0 0
        %2130 = vmatpush2.bf16.msra.mxu0 0
        %2131 = vmatprep.subr.bf16.mxu0 0
        %2132 = vmatpush2.bf16.msra.mxu0 0
        %2133 = vmatprep.subr.bf16.mxu0 0
        %2134 = vmatpush2.bf16.msra.mxu0 0
        %2135 = vmatprep.subr.bf16.mxu0 0
        %2136 = vmatpush2.bf16.msra.mxu0 0
        %2137 = vmatprep.subr.bf16.mxu0 0
        %2138 = vmatpush2.bf16.msra.mxu0 0
        %2139 = vmatprep.mubr.bf16.mxu0 0
        %2140 = vmatmul.mubr.bf16.gmra.mxu0 %v2049
        %v2141 = vpop.f32.mrf.mxu0
        %v2142 = vadd.f32 %v2089, %v2141
        %v2143 = vpop.f32.mrf.mxu0
        %v2144 = vadd.f32 %v2091, %v2143
        %v2145 = vpop.f32.mrf.mxu0
        %v2146 = vadd.f32 %v2093, %v2145
        %v2147 = vpop.f32.mrf.mxu0
        %v2148 = vadd.f32 %v2095, %v2147
        %2149 = vmatprep.mubr.bf16.mxu0 0
        %2150 = vmatmul.mubr.bf16.gmra.mxu0 %v2052
        %v2151 = vpop.f32.mrf.mxu0
        %v2152 = vadd.f32 %v2099, %v2151
        %v2153 = vpop.f32.mrf.mxu0
        %v2154 = vadd.f32 %v2101, %v2153
        %v2155 = vpop.f32.mrf.mxu0
        %v2156 = vadd.f32 %v2103, %v2155
        %v2157 = vpop.f32.mrf.mxu0
        %v2158 = vadd.f32 %v2105, %v2157
        %2159 = vdwg.mxu0
        %v2160 = vmul.f32 %v2142, 0.1
        %v2161 = vmul.f32 %v2144, 0.1
        %v2162 = vmul.f32 %v2146, 0.1
        %v2163 = vmul.f32 %v2148, 0.1
        %v2164 = vmul.f32 %v2152, 0.1
        %v2165 = vmul.f32 %v2154, 0.1
        %v2166 = vmul.f32 %v2156, 0.1
        %v2167 = vmul.f32 %v2158, 0.1
        %v2168 = vld [vmem:[%s252] sm:$0xff]
        %v2169 = vld [vmem:[%s252 + $0x8] sm:$0xff]
        %v2170 = vld [vmem:[%s252 + $0x10] sm:$0xff]
        %v2171 = vld [vmem:[%s252 + $0x18] sm:$0xff]
        %v2172 = vld [vmem:[%s252 + $0x20] sm:$0xff]
        %v2173 = vld [vmem:[%s252 + $0x28] sm:$0xff]
        %v2174 = vld [vmem:[%s252 + $0x30] sm:$0xff]
        %v2175 = vld [vmem:[%s252 + $0x38] sm:$0xff]
        %v2176 = vadd.f32 %v2160, %v2168
        %v2177 = vadd.f32 %v2161, %v2169
        %v2178 = vadd.f32 %v2162, %v2170
        %v2179 = vadd.f32 %v2163, %v2171
        %v2180 = vadd.f32 %v2164, %v2172
        %v2181 = vadd.f32 %v2165, %v2173
        %v2182 = vadd.f32 %v2166, %v2174
        %v2183 = vadd.f32 %v2167, %v2175
        %2184 = vst [vmem:[%s284] sm:$0xff] %v2176
        %2185 = vst [vmem:[%s284 + $0x8] sm:$0xff] %v2177
        %2186 = vst [vmem:[%s284 + $0x10] sm:$0xff] %v2178
        %2187 = vst [vmem:[%s284 + $0x18] sm:$0xff] %v2179
        %2188 = vst [vmem:[%s284 + $0x20] sm:$0xff] %v2180
        %2189 = vst [vmem:[%s284 + $0x28] sm:$0xff] %v2181
        %2190 = vst [vmem:[%s284 + $0x30] sm:$0xff] %v2182
        %2191 = vst [vmem:[%s284 + $0x38] sm:$0xff] %v2183
        %s2192 = sand.u32 %s163, 1
        %s2193 = scalar_lea.sflag [#allocation6], %s2192
        %s2194 = sand.u32 %s163, 1
        %s2195 = smul.addr %s2194, 64
        %s2196 = scalar_lea.vmem [#allocation9], %s2195
        // Predicated region
        $region53: #{tpu_custom_call.1} parent=43 // pred_check
          %p2197 = pneg %p173
        $region54: #{tpu_custom_call.1} parent=43 // pred_check_branch
          %2199 = sbr.rel (%p2197) target = $region56
        $region55: #{tpu_custom_call.1} parent=43 // pred_region
          %s2201 = ssub.s32 1024, 1024
          %2202 = vsyncadd %s2193, %s2201
          %s2203 = smul.addr %s24, 8
          %s2204 = smul.addr %s2203, 128
          %s2205 = scalar_lea.hbm %s6, %s2204
          %s2206 = sshll.u32 %s2196, 4
          %s2207 = int_to_ptr.vmem [resolvable:$true] %s2206
          %2212 = dma.vmem_to_hbm [thread:$0]  %s2207, 1024, %s2205, %s2193, 256, 256, 16
        $region56: #{tpu_custom_call.1} parent=43 // pred_fallthru
          _
      $region44: #{tpu_custom_call.1} parent=5 // pred_fallthru
        _
      %p2213 = scmp.le.s32.totalorder 2, %s19
      // Predicated region
      $region57: #{tpu_custom_call.1} parent=5 // pred_check
        %p2214 = pneg %p2213
      $region58: #{tpu_custom_call.1} parent=5 // pred_check_branch
        %2216 = sbr.rel (%p2214) target = $region60
      $region59: #{tpu_custom_call.1} parent=5 // pred_region
        %s2217 = ssub.s32 %s19, 2
        // Predicated region
        $region61: #{tpu_custom_call.1} parent=59 // pred_check
          %p2218 = pneg %p179
        $region62: #{tpu_custom_call.1} parent=59 // pred_check_branch
          %2220 = sbr.rel (%p2218) target = $region64
        $region63: #{tpu_custom_call.1} parent=59 // pred_region
          %s2221 = sand.u32 %s164, 1
          %s2222 = scalar_lea.sflag [#allocation6], %s2221
          %s2223 = sand.u32 %s164, 1
          %s2224 = smul.addr %s2223, 64
          %s2225 = scalar_lea.vmem [#allocation9], %s2224
          %2226 = dma.done %s2222, 1024
        $region64: #{tpu_custom_call.1} parent=59 // pred_fallthru
          _
      $region60: #{tpu_custom_call.1} parent=5 // pred_fallthru
        _
    $region6: #{tpu_custom_call.1} parent=1 // loop_footer
      %s23 = sadd.s32 1, %s19
    $region7: #{tpu_custom_call.1} parent=1 // loop_footer_branch
      %18 = sbr.rel target = $region3
    $region8: #{tpu_custom_call.1} parent=1 // loop_exit
      _
    %2227 = vsyncpa [#allocation5], 1
    %s2228 = scalar_lea.sflag [#allocation5], 1
    %2229 = vsyncpa %s2228, 1
    %2230 = vsyncpa [#allocation8], 1
    %2231 = vsyncpa [#allocation6], 1
    %s2232 = scalar_lea.sflag [#allocation6], 1
    %2233 = vsyncpa %s2232, 1

</llo_original>
